<compile_context>
chip_gen: v7x
topology: tpu7x:2x2x1
jax: 0.10.0
libtpu: 0.0.40
codegen_flags: <defaults>
</compile_context>

<pallas_src>
import numpy as np
import jax
import jax.numpy as jnp
from jax.experimental import pallas as pl
from jax.experimental.pallas import tpu as pltpu


def _round_up(x, m):
    return ((x + m - 1) // m) * m


def _encoder_kernel(x_ref, w1_ref, b1_ref, w2_ref, b2_ref,
                    w3_ref, b3_ref, w4_ref, b4_ref, cmask_ref, o_ref):
    """One batch tile: fused gather + 4-layer MLP + fused scatter/passthrough.

    x_ref holds the FULL-width (padded) input tile in f32.  w1 has zero rows at
    control positions (fused input gather), w4/b4 columns are pre-placed at
    their final output positions with zeros at control positions (fused output
    scatter), and the final select passes control columns through from the
    full-precision x tile (bit-exact passthrough).
    """
    x = x_ref[...]                                              # (tb, d_p) f32
    h = jnp.dot(x.astype(jnp.bfloat16), w1_ref[...],
                preferred_element_type=jnp.float32) + b1_ref[...]
    h = jnp.maximum(h, 0.0)
    h = jnp.dot(h.astype(jnp.bfloat16), w2_ref[...],
                preferred_element_type=jnp.float32) + b2_ref[...]
    h = jnp.maximum(h, 0.0)
    h = jnp.dot(h.astype(jnp.bfloat16), w3_ref[...],
                preferred_element_type=jnp.float32) + b3_ref[...]
    h = jnp.maximum(h, 0.0)
    y = jnp.dot(h.astype(jnp.bfloat16), w4_ref[...],
                preferred_element_type=jnp.float32) + b4_ref[...]
    keep_x = jnp.broadcast_to(cmask_ref[...], x.shape) != 0.0   # control lanes
    o_ref[...] = jnp.where(keep_x, x, y).astype(o_ref.dtype)


def encoder_forward(x, params, nxny, P, control_indices, *, tile_b=256):
    """Forward pass of the PyTorch `Encoder` as a single fused Pallas kernel."""
    # PyTorch's `y[:, mask] = y_non_control` (mask of length nxny on a (B, P)
    # tensor) implicitly requires P == nxny; make that explicit.
    assert P == nxny, "Encoder.forward's boolean scatter requires P == nxny"

    B = x.shape[0]
    control_idx = np.asarray(control_indices, dtype=np.int32)
    mask = np.ones(nxny, dtype=bool)
    mask[control_idx] = False
    non_control_idx = np.nonzero(mask)[0].astype(np.int32)      # static at trace
    H = params["w1"].shape[1]

    LANE = 128
    d_p = _round_up(nxny, LANE)        # padded (full) input width == output width
    h_p = _round_up(H, LANE)

    # Batch tiling: f32 input -> sublane multiple of 8.  Keep >= 2 grid steps
    # when possible so the 'parallel' axis can shard across v7x's two TCs.
    b_pad = _round_up(B, 8)
    tb = min(tile_b, b_pad)
    if b_pad > 8:
        tb = min(tb, max(8, _round_up(-(-b_pad // 2), 8)))
    b_pad = _round_up(b_pad, tb)
    grid = (b_pad // tb,)

    def as_row(b):                      # accept (fan_out,) or (1, fan_out) biases
        return jnp.asarray(b, jnp.float32).reshape(1, -1)

    def pad2(a, r, c, dtype):
        a = jnp.asarray(a, jnp.float32)
        return jnp.pad(a, ((0, r - a.shape[0]), (0, c - a.shape[1]))).astype(dtype)

    # Fused input gather: zero rows of w1 at control positions.
    w1_full = jnp.zeros((nxny, H), jnp.float32).at[non_control_idx, :].set(
        jnp.asarray(params["w1"], jnp.float32))
    # Fused output scatter: w4/b4 columns pre-placed at their final positions.
    w4_full = jnp.zeros((H, P), jnp.float32).at[:, non_control_idx].set(
        jnp.asarray(params["w4"], jnp.float32))
    b4_full = jnp.zeros((1, P), jnp.float32).at[:, non_control_idx].set(
        as_row(params["b4"]))
    # Control-column mask (1.0 -> pass x through).
    cmask_np = np.zeros((1, d_p), np.float32)
    cmask_np[0, control_idx] = 1.0
    cmask = jnp.asarray(cmask_np)

    # Feed x in f32 (pad only); the bf16 cast happens inside the kernel.
    x_p = jnp.pad(jnp.asarray(x, jnp.float32), ((0, b_pad - B), (0, d_p - nxny)))

    const_args = (
        pad2(w1_full, d_p, h_p, jnp.bfloat16), pad2(as_row(params["b1"]), 1, h_p, jnp.float32),
        pad2(params["w2"], h_p, h_p, jnp.bfloat16), pad2(as_row(params["b2"]), 1, h_p, jnp.float32),
        pad2(params["w3"], h_p, h_p, jnp.bfloat16), pad2(as_row(params["b3"]), 1, h_p, jnp.float32),
        pad2(w4_full, h_p, d_p, jnp.bfloat16), pad2(b4_full, 1, d_p, jnp.float32),
        cmask,
    )

    out_dtype = jnp.dtype(x.dtype)
    const_bytes = sum(int(a.size) * a.dtype.itemsize for a in const_args)
    flops = 2 * b_pad * (d_p * h_p + 2 * h_p * h_p + h_p * d_p)
    bytes_accessed = int(x_p.size) * 4 + const_bytes + b_pad * d_p * out_dtype.itemsize

    # TODO(synk): for hidden dims where the resident bf16 weights exceed ~1/2 of
    # per-TC VMEM (v7x: 64 MiB total), add a hidden-blocked reduction grid axis
    # ('arbitrary', last) with an f32 accumulator scratch instead of keeping all
    # four weight matrices VMEM-resident.

    def call(single_buffer_consts):
        cmode = {"pipeline_mode": pl.Buffered(1)} if single_buffer_consts else {}

        def const(shape):
            # index_map never changes -> stays VMEM resident across the batch
            # grid; single-buffered (no dead second copy) when supported.
            return pl.BlockSpec(shape, lambda i: (0,) * len(shape), **cmode)

        in_specs = [
            pl.BlockSpec((tb, d_p), lambda i: (i, 0)),   # x: pipelined over batch
            const((d_p, h_p)), const((1, h_p)),
            const((h_p, h_p)), const((1, h_p)),
            const((h_p, h_p)), const((1, h_p)),
            const((h_p, d_p)), const((1, d_p)),
            const((1, d_p)),                              # control-column mask
        ]
        out_specs = pl.BlockSpec((tb, d_p), lambda i: (i, 0))

        n_const_bufs = 1 if single_buffer_consts else 2
        footprint = (n_const_bufs * const_bytes
                     + 2 * tb * d_p * 4                       # x tiles (double-buffered)
                     + 2 * tb * d_p * out_dtype.itemsize      # out tiles
                     + 4 * tb * max(h_p, d_p) * 4)            # f32 intermediates
        vmem_limit = int(min(max(footprint + (4 << 20), 8 << 20), 100 << 20))

        return pl.pallas_call(
            _encoder_kernel,
            out_shape=jax.ShapeDtypeStruct((b_pad, d_p), out_dtype),
            grid=grid,
            in_specs=in_specs,
            out_specs=out_specs,
            compiler_params=pltpu.CompilerParams(
                dimension_semantics=("parallel",),   # shard batch tiles across TCs (v7x)
                vmem_limit_bytes=vmem_limit,
            ),
            cost_estimate=pl.CostEstimate(flops=flops, transcendentals=0,
                                          bytes_accessed=bytes_accessed),
        )(x_p, *const_args)

    try:
        out = jax.block_until_ready(call(single_buffer_consts=True))
    except Exception:
        # pl.Buffered(1) on top-level BlockSpecs unsupported in this jax version.
        out = call(single_buffer_consts=False)

    return out[:B, :P]


def init_params(key, nxny, M, hidden_dim, P):
    """PyTorch-style (uniform +/- 1/sqrt(fan_in)) init. W is (in, out); b is 1-D."""
    dims = [(nxny - M, hidden_dim), (hidden_dim, hidden_dim),
            (hidden_dim, hidden_dim), (hidden_dim, P - M)]
    params = {}
    for i, (fan_in, fan_out) in enumerate(dims, start=1):
        key, kw, kb = jax.random.split(key, 3)
        bound = 1.0 / np.sqrt(fan_in)
        params[f"w{i}"] = jax.random.uniform(kw, (fan_in, fan_out), jnp.float32, -bound, bound)
        params[f"b{i}"] = jax.random.uniform(kb, (fan_out,), jnp.float32, -bound, bound)
    return params


def _reference_forward(x, params, nxny, P, control_indices):
    """Pure-JAX f32 reference (same semantics as the PyTorch module)."""
    control_idx = np.asarray(control_indices, dtype=np.int32)
    mask = np.ones(nxny, dtype=bool)
    mask[control_idx] = False
    nc = np.nonzero(mask)[0]
    h = x[:, nc]
    h = jnp.maximum(h @ params["w1"] + params["b1"], 0.0)
    h = jnp.maximum(h @ params["w2"] + params["b2"], 0.0)
    h = jnp.maximum(h @ params["w3"] + params["b3"], 0.0)
    out = h @ params["w4"] + params["b4"]
    y = jnp.zeros((x.shape[0], P), dtype=x.dtype)
    y = y.at[:, control_idx].set(x[:, control_idx])
    y = y.at[:, nc].set(out)
    return y


if __name__ == "__main__":
    # Small shapes consistent with the module (P == nxny, as the PyTorch
    # forward's boolean scatter implicitly requires).
    B, nxny, M, hidden_dim, P = 2, 16, 4, 32, 16
    control_indices = [0, 5, 7, 12]

    key = jax.random.PRNGKey(0)
    key, kx = jax.random.split(key)
    x = jax.random.normal(kx, (B, nxny), dtype=jnp.float32)
    params = init_params(key, nxny, M, hidden_dim, P)

    y = encoder_forward(x, params, nxny, P, control_indices)
    jax.block_until_ready(y)

    y_ref = _reference_forward(x, params, nxny, P, control_indices)
    assert y.shape == (B, P)
    # bf16 MXU operands with f32 accumulation vs f32 reference -> loose tolerance.
    np.testing.assert_allclose(np.asarray(y), np.asarray(y_ref), rtol=2e-2, atol=2e-2)
    # Control columns must pass through bit-exactly from x (full-precision select).
    np.testing.assert_array_equal(np.asarray(y)[:, control_indices],
                                  np.asarray(x)[:, control_indices])

    print("KERNEL_OK")
</pallas_src>

<mosaic_0001>
module attributes {stable_mosaic.version = 11 : i64} {
  func.func @_encoder_kernel(%arg0: i32, %arg1: memref<8x128xf32, #tpu.memory_space<vmem>>, %arg2: memref<128x128xbf16, #tpu.memory_space<vmem>>, %arg3: memref<1x128xf32, #tpu.memory_space<vmem>>, %arg4: memref<128x128xbf16, #tpu.memory_space<vmem>>, %arg5: memref<1x128xf32, #tpu.memory_space<vmem>>, %arg6: memref<128x128xbf16, #tpu.memory_space<vmem>>, %arg7: memref<1x128xf32, #tpu.memory_space<vmem>>, %arg8: memref<128x128xbf16, #tpu.memory_space<vmem>>, %arg9: memref<1x128xf32, #tpu.memory_space<vmem>>, %arg10: memref<1x128xf32, #tpu.memory_space<vmem>>, %arg11: memref<8x128xf32, #tpu.memory_space<vmem>>) attributes {dimension_semantics = [#tpu.dimension_semantics<parallel>], iteration_bounds = array<i64: 1>, scalar_prefetch = 0 : i64, scratch_operands = 0 : i64, tpu.core_type = #tpu.core_type<tc>, window_params = [{transform_indices = @transform_0, window_bounds = array<i64: 8, 128>}, {pipeline_mode = #tpu.pipeline_mode<synchronous>, transform_indices = @transform_1, window_bounds = array<i64: 128, 128>}, {pipeline_mode = #tpu.pipeline_mode<synchronous>, transform_indices = @transform_2, window_bounds = array<i64: 1, 128>}, {pipeline_mode = #tpu.pipeline_mode<synchronous>, transform_indices = @transform_3, window_bounds = array<i64: 128, 128>}, {pipeline_mode = #tpu.pipeline_mode<synchronous>, transform_indices = @transform_4, window_bounds = array<i64: 1, 128>}, {pipeline_mode = #tpu.pipeline_mode<synchronous>, transform_indices = @transform_5, window_bounds = array<i64: 128, 128>}, {pipeline_mode = #tpu.pipeline_mode<synchronous>, transform_indices = @transform_6, window_bounds = array<i64: 1, 128>}, {pipeline_mode = #tpu.pipeline_mode<synchronous>, transform_indices = @transform_7, window_bounds = array<i64: 128, 128>}, {pipeline_mode = #tpu.pipeline_mode<synchronous>, transform_indices = @transform_8, window_bounds = array<i64: 1, 128>}, {pipeline_mode = #tpu.pipeline_mode<synchronous>, transform_indices = @transform_9, window_bounds = array<i64: 1, 128>}, {transform_indices = @transform_10, window_bounds = array<i64: 8, 128>}]} {
    %c0 = arith.constant 0 : index
    %c0_0 = arith.constant 0 : index
    %0 = vector.load %arg1[%c0, %c0_0] : memref<8x128xf32, #tpu.memory_space<vmem>>, vector<8x128xf32>
    %1 = arith.truncf %0 : vector<8x128xf32> to vector<8x128xbf16>
    %c0_1 = arith.constant 0 : index
    %c0_2 = arith.constant 0 : index
    %2 = vector.load %arg2[%c0_1, %c0_2] : memref<128x128xbf16, #tpu.memory_space<vmem>>, vector<128x128xbf16>
    %cst = arith.constant dense<0.000000e+00> : vector<8x128xf32>
    %3 = tpu.matmul %1, %2, %cst {dimension_numbers = #tpu.dot_dimension_numbers<[1], [0], [0], [1], [0, 0, 1, 1], [], []>} : vector<8x128xbf16>, vector<128x128xbf16>, vector<8x128xf32> -> vector<8x128xf32>
    %c0_3 = arith.constant 0 : index
    %c0_4 = arith.constant 0 : index
    %4 = vector.load %arg3[%c0_3, %c0_4] : memref<1x128xf32, #tpu.memory_space<vmem>>, vector<1x128xf32>
    %5 = vector.broadcast %4 : vector<1x128xf32> to vector<8x128xf32>
    %6 = arith.addf %3, %5 : vector<8x128xf32>
    %cst_5 = arith.constant 0.000000e+00 : f32
    %7 = vector.broadcast %cst_5 : f32 to vector<8x128xf32>
    %8 = arith.maximumf %6, %7 : vector<8x128xf32>
    %9 = arith.truncf %8 : vector<8x128xf32> to vector<8x128xbf16>
    %c0_6 = arith.constant 0 : index
    %c0_7 = arith.constant 0 : index
    %10 = vector.load %arg4[%c0_6, %c0_7] : memref<128x128xbf16, #tpu.memory_space<vmem>>, vector<128x128xbf16>
    %cst_8 = arith.constant dense<0.000000e+00> : vector<8x128xf32>
    %11 = tpu.matmul %9, %10, %cst_8 {dimension_numbers = #tpu.dot_dimension_numbers<[1], [0], [0], [1], [0, 0, 1, 1], [], []>} : vector<8x128xbf16>, vector<128x128xbf16>, vector<8x128xf32> -> vector<8x128xf32>
    %c0_9 = arith.constant 0 : index
    %c0_10 = arith.constant 0 : index
    %12 = vector.load %arg5[%c0_9, %c0_10] : memref<1x128xf32, #tpu.memory_space<vmem>>, vector<1x128xf32>
    %13 = vector.broadcast %12 : vector<1x128xf32> to vector<8x128xf32>
    %14 = arith.addf %11, %13 : vector<8x128xf32>
    %cst_11 = arith.constant 0.000000e+00 : f32
    %15 = vector.broadcast %cst_11 : f32 to vector<8x128xf32>
    %16 = arith.maximumf %14, %15 : vector<8x128xf32>
    %17 = arith.truncf %16 : vector<8x128xf32> to vector<8x128xbf16>
    %c0_12 = arith.constant 0 : index
    %c0_13 = arith.constant 0 : index
    %18 = vector.load %arg6[%c0_12, %c0_13] : memref<128x128xbf16, #tpu.memory_space<vmem>>, vector<128x128xbf16>
    %cst_14 = arith.constant dense<0.000000e+00> : vector<8x128xf32>
    %19 = tpu.matmul %17, %18, %cst_14 {dimension_numbers = #tpu.dot_dimension_numbers<[1], [0], [0], [1], [0, 0, 1, 1], [], []>} : vector<8x128xbf16>, vector<128x128xbf16>, vector<8x128xf32> -> vector<8x128xf32>
    %c0_15 = arith.constant 0 : index
    %c0_16 = arith.constant 0 : index
    %20 = vector.load %arg7[%c0_15, %c0_16] : memref<1x128xf32, #tpu.memory_space<vmem>>, vector<1x128xf32>
    %21 = vector.broadcast %20 : vector<1x128xf32> to vector<8x128xf32>
    %22 = arith.addf %19, %21 : vector<8x128xf32>
    %cst_17 = arith.constant 0.000000e+00 : f32
    %23 = vector.broadcast %cst_17 : f32 to vector<8x128xf32>
    %24 = arith.maximumf %22, %23 : vector<8x128xf32>
    %25 = arith.truncf %24 : vector<8x128xf32> to vector<8x128xbf16>
    %c0_18 = arith.constant 0 : index
    %c0_19 = arith.constant 0 : index
    %26 = vector.load %arg8[%c0_18, %c0_19] : memref<128x128xbf16, #tpu.memory_space<vmem>>, vector<128x128xbf16>
    %cst_20 = arith.constant dense<0.000000e+00> : vector<8x128xf32>
    %27 = tpu.matmul %25, %26, %cst_20 {dimension_numbers = #tpu.dot_dimension_numbers<[1], [0], [0], [1], [0, 0, 1, 1], [], []>} : vector<8x128xbf16>, vector<128x128xbf16>, vector<8x128xf32> -> vector<8x128xf32>
    %c0_21 = arith.constant 0 : index
    %c0_22 = arith.constant 0 : index
    %28 = vector.load %arg9[%c0_21, %c0_22] : memref<1x128xf32, #tpu.memory_space<vmem>>, vector<1x128xf32>
    %29 = vector.broadcast %28 : vector<1x128xf32> to vector<8x128xf32>
    %30 = arith.addf %27, %29 : vector<8x128xf32>
    %c0_23 = arith.constant 0 : index
    %c0_24 = arith.constant 0 : index
    %31 = vector.load %arg10[%c0_23, %c0_24] : memref<1x128xf32, #tpu.memory_space<vmem>>, vector<1x128xf32>
    %32 = vector.shape_cast %31 : vector<1x128xf32> to vector<1x128xf32>
    %33 = vector.broadcast %32 : vector<1x128xf32> to vector<8x128xf32>
    %cst_25 = arith.constant 0.000000e+00 : f32
    %34 = vector.broadcast %cst_25 : f32 to vector<8x128xf32>
    %35 = arith.cmpf one, %33, %34 : vector<8x128xf32>
    %36 = arith.select %35, %0, %30 : vector<8x128xi1>, vector<8x128xf32>
    %c0_26 = arith.constant 0 : index
    %c0_27 = arith.constant 0 : index
    %37 = vector.load %arg11[%c0_26, %c0_27] : memref<8x128xf32, #tpu.memory_space<vmem>>, vector<8x128xf32>
    tpu.vector_store %arg11[%c0_26, %c0_27], %36 {strides = array<i32>} : memref<8x128xf32, #tpu.memory_space<vmem>>, vector<8x128xf32>,
    return
  }
  func.func @transform_0(%arg0: i32) -> (i32, i32) {
    %c0_i32 = arith.constant 0 : i32
    %c0_i32_0 = arith.constant 0 : i32
    return %arg0, %c0_i32 : i32, i32
  }
  func.func @transform_1(%arg0: i32) -> (i32, i32) {
    %c0_i32 = arith.constant 0 : i32
    %c0_i32_0 = arith.constant 0 : i32
    %c0_i32_1 = arith.constant 0 : i32
    return %c0_i32, %c0_i32_0 : i32, i32
  }
  func.func @transform_2(%arg0: i32) -> (i32, i32) {
    %c0_i32 = arith.constant 0 : i32
    %c0_i32_0 = arith.constant 0 : i32
    %c0_i32_1 = arith.constant 0 : i32
    return %c0_i32, %c0_i32_0 : i32, i32
  }
  func.func @transform_3(%arg0: i32) -> (i32, i32) {
    %c0_i32 = arith.constant 0 : i32
    %c0_i32_0 = arith.constant 0 : i32
    %c0_i32_1 = arith.constant 0 : i32
    return %c0_i32, %c0_i32_0 : i32, i32
  }
  func.func @transform_4(%arg0: i32) -> (i32, i32) {
    %c0_i32 = arith.constant 0 : i32
    %c0_i32_0 = arith.constant 0 : i32
    %c0_i32_1 = arith.constant 0 : i32
    return %c0_i32, %c0_i32_0 : i32, i32
  }
  func.func @transform_5(%arg0: i32) -> (i32, i32) {
    %c0_i32 = arith.constant 0 : i32
    %c0_i32_0 = arith.constant 0 : i32
    %c0_i32_1 = arith.constant 0 : i32
    return %c0_i32, %c0_i32_0 : i32, i32
  }
  func.func @transform_6(%arg0: i32) -> (i32, i32) {
    %c0_i32 = arith.constant 0 : i32
    %c0_i32_0 = arith.constant 0 : i32
    %c0_i32_1 = arith.constant 0 : i32
    return %c0_i32, %c0_i32_0 : i32, i32
  }
  func.func @transform_7(%arg0: i32) -> (i32, i32) {
    %c0_i32 = arith.constant 0 : i32
    %c0_i32_0 = arith.constant 0 : i32
    %c0_i32_1 = arith.constant 0 : i32
    return %c0_i32, %c0_i32_0 : i32, i32
  }
  func.func @transform_8(%arg0: i32) -> (i32, i32) {
    %c0_i32 = arith.constant 0 : i32
    %c0_i32_0 = arith.constant 0 : i32
    %c0_i32_1 = arith.constant 0 : i32
    return %c0_i32, %c0_i32_0 : i32, i32
  }
  func.func @transform_9(%arg0: i32) -> (i32, i32) {
    %c0_i32 = arith.constant 0 : i32
    %c0_i32_0 = arith.constant 0 : i32
    %c0_i32_1 = arith.constant 0 : i32
    return %c0_i32, %c0_i32_0 : i32, i32
  }
  func.func @transform_10(%arg0: i32) -> (i32, i32) {
    %c0_i32 = arith.constant 0 : i32
    %c0_i32_0 = arith.constant 0 : i32
    return %arg0, %c0_i32 : i32, i32
  }
}

module attributes {stable_mosaic.version = 11 : i64} {
  func.func @_encoder_kernel(%arg0: i32, %arg1: memref<8x128xf32, #tpu.memory_space<vmem>>, %arg2: memref<128x128xbf16, #tpu.memory_space<vmem>>, %arg3: memref<1x128xf32, #tpu.memory_space<vmem>>, %arg4: memref<128x128xbf16, #tpu.memory_space<vmem>>, %arg5: memref<1x128xf32, #tpu.memory_space<vmem>>, %arg6: memref<128x128xbf16, #tpu.memory_space<vmem>>, %arg7: memref<1x128xf32, #tpu.memory_space<vmem>>, %arg8: memref<128x128xbf16, #tpu.memory_space<vmem>>, %arg9: memref<1x128xf32, #tpu.memory_space<vmem>>, %arg10: memref<1x128xf32, #tpu.memory_space<vmem>>, %arg11: memref<8x128xf32, #tpu.memory_space<vmem>>) attributes {dimension_semantics = [#tpu.dimension_semantics<parallel>], iteration_bounds = array<i64: 1>, scalar_prefetch = 0 : i64, scratch_operands = 0 : i64, tpu.core_type = #tpu.core_type<tc>, window_params = [{transform_indices = @transform_0, window_bounds = array<i64: 8, 128>}, {pipeline_mode = #tpu.pipeline_mode<synchronous>, transform_indices = @transform_1, window_bounds = array<i64: 128, 128>}, {pipeline_mode = #tpu.pipeline_mode<synchronous>, transform_indices = @transform_2, window_bounds = array<i64: 1, 128>}, {pipeline_mode = #tpu.pipeline_mode<synchronous>, transform_indices = @transform_3, window_bounds = array<i64: 128, 128>}, {pipeline_mode = #tpu.pipeline_mode<synchronous>, transform_indices = @transform_4, window_bounds = array<i64: 1, 128>}, {pipeline_mode = #tpu.pipeline_mode<synchronous>, transform_indices = @transform_5, window_bounds = array<i64: 128, 128>}, {pipeline_mode = #tpu.pipeline_mode<synchronous>, transform_indices = @transform_6, window_bounds = array<i64: 1, 128>}, {pipeline_mode = #tpu.pipeline_mode<synchronous>, transform_indices = @transform_7, window_bounds = array<i64: 128, 128>}, {pipeline_mode = #tpu.pipeline_mode<synchronous>, transform_indices = @transform_8, window_bounds = array<i64: 1, 128>}, {pipeline_mode = #tpu.pipeline_mode<synchronous>, transform_indices = @transform_9, window_bounds = array<i64: 1, 128>}, {transform_indices = @transform_10, window_bounds = array<i64: 8, 128>}]} {
    %c0 = arith.constant 0 : index
    %c0_0 = arith.constant 0 : index
    %0 = vector.load %arg1[%c0, %c0_0] : memref<8x128xf32, #tpu.memory_space<vmem>>, vector<8x128xf32>
    %1 = arith.truncf %0 : vector<8x128xf32> to vector<8x128xbf16>
    %c0_1 = arith.constant 0 : index
    %c0_2 = arith.constant 0 : index
    %2 = vector.load %arg2[%c0_1, %c0_2] : memref<128x128xbf16, #tpu.memory_space<vmem>>, vector<128x128xbf16>
    %cst = arith.constant dense<0.000000e+00> : vector<8x128xf32>
    %3 = tpu.matmul %1, %2, %cst {dimension_numbers = #tpu.dot_dimension_numbers<[1], [0], [0], [1], [0, 0, 1, 1], [], []>} : vector<8x128xbf16>, vector<128x128xbf16>, vector<8x128xf32> -> vector<8x128xf32>
    %c0_3 = arith.constant 0 : index
    %c0_4 = arith.constant 0 : index
    %4 = vector.load %arg3[%c0_3, %c0_4] : memref<1x128xf32, #tpu.memory_space<vmem>>, vector<1x128xf32>
    %5 = vector.broadcast %4 : vector<1x128xf32> to vector<8x128xf32>
    %6 = arith.addf %3, %5 : vector<8x128xf32>
    %cst_5 = arith.constant 0.000000e+00 : f32
    %7 = vector.broadcast %cst_5 : f32 to vector<8x128xf32>
    %8 = arith.maximumf %6, %7 : vector<8x128xf32>
    %9 = arith.truncf %8 : vector<8x128xf32> to vector<8x128xbf16>
    %c0_6 = arith.constant 0 : index
    %c0_7 = arith.constant 0 : index
    %10 = vector.load %arg4[%c0_6, %c0_7] : memref<128x128xbf16, #tpu.memory_space<vmem>>, vector<128x128xbf16>
    %cst_8 = arith.constant dense<0.000000e+00> : vector<8x128xf32>
    %11 = tpu.matmul %9, %10, %cst_8 {dimension_numbers = #tpu.dot_dimension_numbers<[1], [0], [0], [1], [0, 0, 1, 1], [], []>} : vector<8x128xbf16>, vector<128x128xbf16>, vector<8x128xf32> -> vector<8x128xf32>
    %c0_9 = arith.constant 0 : index
    %c0_10 = arith.constant 0 : index
    %12 = vector.load %arg5[%c0_9, %c0_10] : memref<1x128xf32, #tpu.memory_space<vmem>>, vector<1x128xf32>
    %13 = vector.broadcast %12 : vector<1x128xf32> to vector<8x128xf32>
    %14 = arith.addf %11, %13 : vector<8x128xf32>
    %cst_11 = arith.constant 0.000000e+00 : f32
    %15 = vector.broadcast %cst_11 : f32 to vector<8x128xf32>
    %16 = arith.maximumf %14, %15 : vector<8x128xf32>
    %17 = arith.truncf %16 : vector<8x128xf32> to vector<8x128xbf16>
    %c0_12 = arith.constant 0 : index
    %c0_13 = arith.constant 0 : index
    %18 = vector.load %arg6[%c0_12, %c0_13] : memref<128x128xbf16, #tpu.memory_space<vmem>>, vector<128x128xbf16>
    %cst_14 = arith.constant dense<0.000000e+00> : vector<8x128xf32>
    %19 = tpu.matmul %17, %18, %cst_14 {dimension_numbers = #tpu.dot_dimension_numbers<[1], [0], [0], [1], [0, 0, 1, 1], [], []>} : vector<8x128xbf16>, vector<128x128xbf16>, vector<8x128xf32> -> vector<8x128xf32>
    %c0_15 = arith.constant 0 : index
    %c0_16 = arith.constant 0 : index
    %20 = vector.load %arg7[%c0_15, %c0_16] : memref<1x128xf32, #tpu.memory_space<vmem>>, vector<1x128xf32>
    %21 = vector.broadcast %20 : vector<1x128xf32> to vector<8x128xf32>
    %22 = arith.addf %19, %21 : vector<8x128xf32>
    %cst_17 = arith.constant 0.000000e+00 : f32
    %23 = vector.broadcast %cst_17 : f32 to vector<8x128xf32>
    %24 = arith.maximumf %22, %23 : vector<8x128xf32>
    %25 = arith.truncf %24 : vector<8x128xf32> to vector<8x128xbf16>
    %c0_18 = arith.constant 0 : index
    %c0_19 = arith.constant 0 : index
    %26 = vector.load %arg8[%c0_18, %c0_19] : memref<128x128xbf16, #tpu.memory_space<vmem>>, vector<128x128xbf16>
    %cst_20 = arith.constant dense<0.000000e+00> : vector<8x128xf32>
    %27 = tpu.matmul %25, %26, %cst_20 {dimension_numbers = #tpu.dot_dimension_numbers<[1], [0], [0], [1], [0, 0, 1, 1], [], []>} : vector<8x128xbf16>, vector<128x128xbf16>, vector<8x128xf32> -> vector<8x128xf32>
    %c0_21 = arith.constant 0 : index
    %c0_22 = arith.constant 0 : index
    %28 = vector.load %arg9[%c0_21, %c0_22] : memref<1x128xf32, #tpu.memory_space<vmem>>, vector<1x128xf32>
    %29 = vector.broadcast %28 : vector<1x128xf32> to vector<8x128xf32>
    %30 = arith.addf %27, %29 : vector<8x128xf32>
    %c0_23 = arith.constant 0 : index
    %c0_24 = arith.constant 0 : index
    %31 = vector.load %arg10[%c0_23, %c0_24] : memref<1x128xf32, #tpu.memory_space<vmem>>, vector<1x128xf32>
    %32 = vector.shape_cast %31 : vector<1x128xf32> to vector<1x128xf32>
    %33 = vector.broadcast %32 : vector<1x128xf32> to vector<8x128xf32>
    %cst_25 = arith.constant 0.000000e+00 : f32
    %34 = vector.broadcast %cst_25 : f32 to vector<8x128xf32>
    %35 = arith.cmpf one, %33, %34 : vector<8x128xf32>
    %36 = arith.select %35, %0, %30 : vector<8x128xi1>, vector<8x128xf32>
    %c0_26 = arith.constant 0 : index
    %c0_27 = arith.constant 0 : index
    %37 = vector.load %arg11[%c0_26, %c0_27] : memref<8x128xf32, #tpu.memory_space<vmem>>, vector<8x128xf32>
    tpu.vector_store %arg11[%c0_26, %c0_27], %36 {strides = array<i32>} : memref<8x128xf32, #tpu.memory_space<vmem>>, vector<8x128xf32>,
    return
  }
  func.func @transform_0(%arg0: i32) -> (i32, i32) {
    %c0_i32 = arith.constant 0 : i32
    %c0_i32_0 = arith.constant 0 : i32
    return %arg0, %c0_i32 : i32, i32
  }
  func.func @transform_1(%arg0: i32) -> (i32, i32) {
    %c0_i32 = arith.constant 0 : i32
    %c0_i32_0 = arith.constant 0 : i32
    %c0_i32_1 = arith.constant 0 : i32
    return %c0_i32, %c0_i32_0 : i32, i32
  }
  func.func @transform_2(%arg0: i32) -> (i32, i32) {
    %c0_i32 = arith.constant 0 : i32
    %c0_i32_0 = arith.constant 0 : i32
    %c0_i32_1 = arith.constant 0 : i32
    return %c0_i32, %c0_i32_0 : i32, i32
  }
  func.func @transform_3(%arg0: i32) -> (i32, i32) {
    %c0_i32 = arith.constant 0 : i32
    %c0_i32_0 = arith.constant 0 : i32
    %c0_i32_1 = arith.constant 0 : i32
    return %c0_i32, %c0_i32_0 : i32, i32
  }
  func.func @transform_4(%arg0: i32) -> (i32, i32) {
    %c0_i32 = arith.constant 0 : i32
    %c0_i32_0 = arith.constant 0 : i32
    %c0_i32_1 = arith.constant 0 : i32
    return %c0_i32, %c0_i32_0 : i32, i32
  }
  func.func @transform_5(%arg0: i32) -> (i32, i32) {
    %c0_i32 = arith.constant 0 : i32
    %c0_i32_0 = arith.constant 0 : i32
    %c0_i32_1 = arith.constant 0 : i32
    return %c0_i32, %c0_i32_0 : i32, i32
  }
  func.func @transform_6(%arg0: i32) -> (i32, i32) {
    %c0_i32 = arith.constant 0 : i32
    %c0_i32_0 = arith.constant 0 : i32
    %c0_i32_1 = arith.constant 0 : i32
    return %c0_i32, %c0_i32_0 : i32, i32
  }
  func.func @transform_7(%arg0: i32) -> (i32, i32) {
    %c0_i32 = arith.constant 0 : i32
    %c0_i32_0 = arith.constant 0 : i32
    %c0_i32_1 = arith.constant 0 : i32
    return %c0_i32, %c0_i32_0 : i32, i32
  }
  func.func @transform_8(%arg0: i32) -> (i32, i32) {
    %c0_i32 = arith.constant 0 : i32
    %c0_i32_0 = arith.constant 0 : i32
    %c0_i32_1 = arith.constant 0 : i32
    return %c0_i32, %c0_i32_0 : i32, i32
  }
  func.func @transform_9(%arg0: i32) -> (i32, i32) {
    %c0_i32 = arith.constant 0 : i32
    %c0_i32_0 = arith.constant 0 : i32
    %c0_i32_1 = arith.constant 0 : i32
    return %c0_i32, %c0_i32_0 : i32, i32
  }
  func.func @transform_10(%arg0: i32) -> (i32, i32) {
    %c0_i32 = arith.constant 0 : i32
    %c0_i32_0 = arith.constant 0 : i32
    return %arg0, %c0_i32 : i32, i32
  }
}

</mosaic_0001>

<llo_original>
// kernel: tpu_custom_call.1
$region0: #{tpu_custom_call.1}
  #allocation0 [shape = 'u32[]', space=smem, size = 0x4, offset = 0x4, fixed_abs, tag = 'smem constant byte address 0x4 - core index']
  #allocation1 [shape = 'u32[144,128]{1,0:T(1,128)}', space=vmem, size = 0x12000, scoped, tag = 'internal scratch']
  %s0 = inlined_call_operand.hbm [shape: f32[8,128], index: 0, kind: input, shape index: {}]
  %s1 = inlined_call_operand.hbm [shape: bf16[128,128], index: 1, kind: input, shape index: {}]
  %s2 = inlined_call_operand.vmem [shape: f32[1,128], index: 2, kind: input, shape index: {}]
  %s3 = inlined_call_operand.hbm [shape: bf16[128,128], index: 3, kind: input, shape index: {}]
  %s4 = inlined_call_operand.vmem [shape: f32[1,128], index: 4, kind: input, shape index: {}]
  %s5 = inlined_call_operand.hbm [shape: bf16[128,128], index: 5, kind: input, shape index: {}]
  %s6 = inlined_call_operand.vmem [shape: f32[1,128], index: 6, kind: input, shape index: {}]
  %s7 = inlined_call_operand.hbm [shape: bf16[128,128], index: 7, kind: input, shape index: {}]
  %s8 = inlined_call_operand.vmem [shape: f32[1,128], index: 8, kind: input, shape index: {}]
  %s9 = inlined_call_operand.vmem [shape: f32[1,128], index: 9, kind: input, shape index: {}]
  %s10 = inlined_call_operand.hbm [shape: f32[8,128], index: 10, kind: output, shape index: {}]
  %s11 = sld [smem:[#allocation0]]
  $region70: #{tpu_custom_call.1} parent=0
    _
  %s13 = ssub.s32 1, %s11
  %s14 = scalar_select 0, %s13, %s11
  $region1: #{tpu_custom_call.1} parent=0
    #allocation2 [shape = 'u8[4096]{0}', space=vmem, size = 0x1000, scoped, tag = 'input window, operand 0, single buffered']
    #allocation3 [shape = 's32[1]{0}', space=sflag, size = 0x4, scoped, tag = 'scoped memory for tpu_custom_call.1']
    #allocation4 [shape = 's32[1]{0}', space=sflag, size = 0x4, scoped, tag = 'scoped memory for tpu_custom_call.1']
    #allocation5 [shape = 'u8[32768]{0}', space=vmem, size = 0x8000, scoped, tag = 'input window, operand 1, single buffered']
    #allocation6 [shape = 's32[1]{0}', space=sflag, size = 0x4, scoped, tag = 'scoped memory for tpu_custom_call.1']
    #allocation7 [shape = 'u8[32768]{0}', space=vmem, size = 0x8000, scoped, tag = 'input window, operand 3, single buffered']
    #allocation8 [shape = 'u8[32768]{0}', space=vmem, size = 0x8000, scoped, tag = 'input window, operand 5, single buffered']
    #allocation9 [shape = 's32[1]{0}', space=sflag, size = 0x4, scoped, tag = 'scoped memory for tpu_custom_call.1']
    #allocation10 [shape = 'u8[32768]{0}', space=vmem, size = 0x8000, scoped, tag = 'input window, operand 7, single buffered']
    #allocation11 [shape = 'u8[4096]{0}', space=vmem, size = 0x1000, scoped, tag = 'output window, operand 0, single buffered']
    %15 = vsyncpa [#allocation3], 0
    %16 = vsyncpa [#allocation6], 0
    %17 = vsyncpa [#allocation9], 0
    %18 = vsyncpa [#allocation4], 0
    // Predicated region
    $region2: #{tpu_custom_call.1} parent=1 // pred_check
      _
    $region3: #{tpu_custom_call.1} parent=1 // pred_check_branch
      %20 = sbr.rel (0) target = $region5
    $region4: #{tpu_custom_call.1} parent=1 // pred_region
      %s22 = ssub.s32 128, 128
      %23 = vsyncadd [#allocation3], %s22
      %s25 = sshll.u32 [#allocation2], 4
      %s26 = int_to_ptr.vmem [resolvable:$true] %s25
      %28 = dma.hbm_to_vmem [thread:$0]  %s0, 128, %s26, [#allocation3]
    $region5: #{tpu_custom_call.1} parent=1 // pred_fallthru
      _
    // Predicated region
    $region6: #{tpu_custom_call.1} parent=1 // pred_check
      _
    $region7: #{tpu_custom_call.1} parent=1 // pred_check_branch
      %30 = sbr.rel (0) target = $region9
    $region8: #{tpu_custom_call.1} parent=1 // pred_region
      %s32 = ssub.s32 1024, 1024
      %33 = vsyncadd [#allocation6], %s32
      %s34 = sshll.u32 [#allocation5], 4
      %s35 = int_to_ptr.vmem [resolvable:$true] %s34
      %40 = dma.hbm_to_vmem [thread:$0]  %s1, 1024, %s35, [#allocation6], 64, 64, 4
    $region9: #{tpu_custom_call.1} parent=1 // pred_fallthru
      _
    // Predicated region
    $region10: #{tpu_custom_call.1} parent=1 // pred_check
      _
    $region11: #{tpu_custom_call.1} parent=1 // pred_check_branch
      %42 = sbr.rel (0) target = $region13
    $region12: #{tpu_custom_call.1} parent=1 // pred_region
      _
    $region13: #{tpu_custom_call.1} parent=1 // pred_fallthru
      _
    // Predicated region
    $region14: #{tpu_custom_call.1} parent=1 // pred_check
      _
    $region15: #{tpu_custom_call.1} parent=1 // pred_check_branch
      %44 = sbr.rel (0) target = $region17
    $region16: #{tpu_custom_call.1} parent=1 // pred_region
      %s46 = ssub.s32 1024, 1024
      %47 = vsyncadd [#allocation6], %s46
      %s48 = sshll.u32 [#allocation7], 4
      %s49 = int_to_ptr.vmem [resolvable:$true] %s48
      %54 = dma.hbm_to_vmem [thread:$0]  %s3, 1024, %s49, [#allocation6], 64, 64, 4
    $region17: #{tpu_custom_call.1} parent=1 // pred_fallthru
      _
    // Predicated region
    $region18: #{tpu_custom_call.1} parent=1 // pred_check
      _
    $region19: #{tpu_custom_call.1} parent=1 // pred_check_branch
      %56 = sbr.rel (0) target = $region21
    $region20: #{tpu_custom_call.1} parent=1 // pred_region
      _
    $region21: #{tpu_custom_call.1} parent=1 // pred_fallthru
      _
    // Predicated region
    $region22: #{tpu_custom_call.1} parent=1 // pred_check
      _
    $region23: #{tpu_custom_call.1} parent=1 // pred_check_branch
      %58 = sbr.rel (0) target = $region25
    $region24: #{tpu_custom_call.1} parent=1 // pred_region
      %s60 = ssub.s32 1024, 1024
      %61 = vsyncadd [#allocation9], %s60
      %s62 = sshll.u32 [#allocation8], 4
      %s63 = int_to_ptr.vmem [resolvable:$true] %s62
      %68 = dma.hbm_to_vmem [thread:$0]  %s5, 1024, %s63, [#allocation9], 64, 64, 4
    $region25: #{tpu_custom_call.1} parent=1 // pred_fallthru
      _
    // Predicated region
    $region26: #{tpu_custom_call.1} parent=1 // pred_check
      _
    $region27: #{tpu_custom_call.1} parent=1 // pred_check_branch
      %70 = sbr.rel (0) target = $region29
    $region28: #{tpu_custom_call.1} parent=1 // pred_region
      _
    $region29: #{tpu_custom_call.1} parent=1 // pred_fallthru
      _
    // Predicated region
    $region30: #{tpu_custom_call.1} parent=1 // pred_check
      _
    $region31: #{tpu_custom_call.1} parent=1 // pred_check_branch
      %72 = sbr.rel (0) target = $region33
    $region32: #{tpu_custom_call.1} parent=1 // pred_region
      %s74 = ssub.s32 1024, 1024
      %75 = vsyncadd [#allocation9], %s74
      %s76 = sshll.u32 [#allocation10], 4
      %s77 = int_to_ptr.vmem [resolvable:$true] %s76
      %82 = dma.hbm_to_vmem [thread:$0]  %s7, 1024, %s77, [#allocation9], 64, 64, 4
    $region33: #{tpu_custom_call.1} parent=1 // pred_fallthru
      _
    // Predicated region
    $region34: #{tpu_custom_call.1} parent=1 // pred_check
      _
    $region35: #{tpu_custom_call.1} parent=1 // pred_check_branch
      %84 = sbr.rel (0) target = $region37
    $region36: #{tpu_custom_call.1} parent=1 // pred_region
      _
    $region37: #{tpu_custom_call.1} parent=1 // pred_fallthru
      _
    // Predicated region
    $region38: #{tpu_custom_call.1} parent=1 // pred_check
      _
    $region39: #{tpu_custom_call.1} parent=1 // pred_check_branch
      %86 = sbr.rel (0) target = $region41
    $region40: #{tpu_custom_call.1} parent=1 // pred_region
      _
    $region41: #{tpu_custom_call.1} parent=1 // pred_fallthru
      _
    // Predicated region
    $region42: #{tpu_custom_call.1} parent=1 // pred_check
      _
    $region43: #{tpu_custom_call.1} parent=1 // pred_check_branch
      %88 = sbr.rel (0) target = $region45
    $region44: #{tpu_custom_call.1} parent=1 // pred_region
      %89 = dma.done [#allocation3], 128
    $region45: #{tpu_custom_call.1} parent=1 // pred_fallthru
      _
    // Predicated region
    $region46: #{tpu_custom_call.1} parent=1 // pred_check
      _
    $region47: #{tpu_custom_call.1} parent=1 // pred_check_branch
      %91 = sbr.rel (0) target = $region49
    $region48: #{tpu_custom_call.1} parent=1 // pred_region
      %92 = dma.done [#allocation6], 1024
    $region49: #{tpu_custom_call.1} parent=1 // pred_fallthru
      _
    // Predicated region
    $region50: #{tpu_custom_call.1} parent=1 // pred_check
      _
    $region51: #{tpu_custom_call.1} parent=1 // pred_check_branch
      %94 = sbr.rel (0) target = $region53
    $region52: #{tpu_custom_call.1} parent=1 // pred_region
      %95 = dma.done [#allocation6], 1024
    $region53: #{tpu_custom_call.1} parent=1 // pred_fallthru
      _
    // Predicated region
    $region54: #{tpu_custom_call.1} parent=1 // pred_check
      _
    $region55: #{tpu_custom_call.1} parent=1 // pred_check_branch
      %97 = sbr.rel (0) target = $region57
    $region56: #{tpu_custom_call.1} parent=1 // pred_region
      %98 = dma.done [#allocation9], 1024
    $region57: #{tpu_custom_call.1} parent=1 // pred_fallthru
      _
    // Predicated region
    $region58: #{tpu_custom_call.1} parent=1 // pred_check
      _
    $region59: #{tpu_custom_call.1} parent=1 // pred_check_branch
      %100 = sbr.rel (0) target = $region61
    $region60: #{tpu_custom_call.1} parent=1 // pred_region
      %101 = dma.done [#allocation9], 1024
    $region61: #{tpu_custom_call.1} parent=1 // pred_fallthru
      _
    %v103 = vld [vmem:[#allocation2] sm:$0xff]
    %v104 = vpack.c.bf16 %v103, %v103
    %v105 = vld [vmem:[#allocation5] sm:$0xf]
    %v106 = vld [vmem:[#allocation5 + $0x4] sm:$0xf]
    %v107 = vld [vmem:[#allocation5 + $0x8] sm:$0xf]
    %v108 = vld [vmem:[#allocation5 + $0xc] sm:$0xf]
    %v109 = vld [vmem:[#allocation5 + $0x10] sm:$0xf]
    %v110 = vld [vmem:[#allocation5 + $0x14] sm:$0xf]
    %v111 = vld [vmem:[#allocation5 + $0x18] sm:$0xf]
    %v112 = vld [vmem:[#allocation5 + $0x1c] sm:$0xf]
    %v113 = vld [vmem:[#allocation5 + $0x20] sm:$0xf]
    %v114 = vld [vmem:[#allocation5 + $0x24] sm:$0xf]
    %v115 = vld [vmem:[#allocation5 + $0x28] sm:$0xf]
    %v116 = vld [vmem:[#allocation5 + $0x2c] sm:$0xf]
    %v117 = vld [vmem:[#allocation5 + $0x30] sm:$0xf]
    %v118 = vld [vmem:[#allocation5 + $0x34] sm:$0xf]
    %v119 = vld [vmem:[#allocation5 + $0x38] sm:$0xf]
    %v120 = vld [vmem:[#allocation5 + $0x3c] sm:$0xf]
    %v121 = vld [vmem:[%s2] sm:$0x1]
    %v123 = vlaneseq
    %v124 = vshrl.u32 %v123, 7
    %v125 = vsub.s32 0, %v124
    %v126 = vrot.slane %v121, %v125
    %v144 = vunpack.c.l.b16 %v105
    %v145 = vunpack.c.l.b16 %v106
    %v146 = vunpack.c.l.b16 %v107
    %v147 = vunpack.c.l.b16 %v108
    %v148 = vunpack.c.l.b16 %v109
    %v149 = vunpack.c.l.b16 %v110
    %v150 = vunpack.c.l.b16 %v111
    %v151 = vunpack.c.l.b16 %v112
    %v152 = vunpack.c.l.b16 %v113
    %v153 = vunpack.c.l.b16 %v114
    %v154 = vunpack.c.l.b16 %v115
    %v155 = vunpack.c.l.b16 %v116
    %v156 = vunpack.c.l.b16 %v117
    %v157 = vunpack.c.l.b16 %v118
    %v158 = vunpack.c.l.b16 %v119
    %v159 = vunpack.c.l.b16 %v120
    %v160 = vpack.c.b16 %v145, %v144
    %v161 = vpack.c.b16 %v147, %v146
    %v162 = vpack.c.b16 %v149, %v148
    %v163 = vpack.c.b16 %v151, %v150
    %v164 = vpack.c.b16 %v153, %v152
    %v165 = vpack.c.b16 %v155, %v154
    %v166 = vpack.c.b16 %v157, %v156
    %v167 = vpack.c.b16 %v159, %v158
    %176 = vmatprep.subr.bf16.mxu0 0
    %177 = vmatpush1.bf16.msra.mxu0 %v160
    %178 = vmatprep.subr.bf16.mxu0 0
    %179 = vmatpush1.bf16.msra.mxu0 %v161
    %180 = vmatprep.subr.bf16.mxu0 0
    %181 = vmatpush1.bf16.msra.mxu0 %v162
    %182 = vmatprep.subr.bf16.mxu0 0
    %183 = vmatpush1.bf16.msra.mxu0 %v163
    %184 = vmatprep.subr.bf16.mxu0 0
    %185 = vmatpush1.bf16.msra.mxu0 %v164
    %186 = vmatprep.subr.bf16.mxu0 0
    %187 = vmatpush1.bf16.msra.mxu0 %v165
    %188 = vmatprep.subr.bf16.mxu0 0
    %189 = vmatpush1.bf16.msra.mxu0 %v166
    %190 = vmatprep.subr.bf16.mxu0 0
    %191 = vmatpush1.bf16.msra.mxu0 %v167
    %192 = vmatprep.subr.bf16.mxu0 0
    %193 = vmatpush1.bf16.msra.mxu0 0
    %194 = vmatprep.subr.bf16.mxu0 0
    %195 = vmatpush1.bf16.msra.mxu0 0
    %196 = vmatprep.subr.bf16.mxu0 0
    %197 = vmatpush1.bf16.msra.mxu0 0
    %198 = vmatprep.subr.bf16.mxu0 0
    %199 = vmatpush1.bf16.msra.mxu0 0
    %200 = vmatprep.subr.bf16.mxu0 0
    %201 = vmatpush1.bf16.msra.mxu0 0
    %202 = vmatprep.subr.bf16.mxu0 0
    %203 = vmatpush1.bf16.msra.mxu0 0
    %204 = vmatprep.subr.bf16.mxu0 0
    %205 = vmatpush1.bf16.msra.mxu0 0
    %206 = vmatprep.subr.bf16.mxu0 0
    %207 = vmatpush1.bf16.msra.mxu0 0
    %208 = vmatprep.mubr.bf16.mxu0 0
    %209 = vmatmul.mubr.bf16.gmra.mrb[0].mxu0 %v104
    %v210 = vpop.f32.mrb[0].mxu0
    %v211 = vadd.f32 %v126, %v210
    %v212 = vpop.f32.mrb[0].mxu0
    %v213 = vpop.f32.mrb[0].mxu0
    %v214 = vpop.f32.mrb[0].mxu0
    %215 = vdwg.mxu0
    %v216 = vmax.f32 %v211, 0.0
    %v217 = vpack.c.bf16 %v216, %v216
    %v218 = vld [vmem:[#allocation7] sm:$0xf]
    %v219 = vld [vmem:[#allocation7 + $0x4] sm:$0xf]
    %v220 = vld [vmem:[#allocation7 + $0x8] sm:$0xf]
    %v221 = vld [vmem:[#allocation7 + $0xc] sm:$0xf]
    %v222 = vld [vmem:[#allocation7 + $0x10] sm:$0xf]
    %v223 = vld [vmem:[#allocation7 + $0x14] sm:$0xf]
    %v224 = vld [vmem:[#allocation7 + $0x18] sm:$0xf]
    %v225 = vld [vmem:[#allocation7 + $0x1c] sm:$0xf]
    %v226 = vld [vmem:[#allocation7 + $0x20] sm:$0xf]
    %v227 = vld [vmem:[#allocation7 + $0x24] sm:$0xf]
    %v228 = vld [vmem:[#allocation7 + $0x28] sm:$0xf]
    %v229 = vld [vmem:[#allocation7 + $0x2c] sm:$0xf]
    %v230 = vld [vmem:[#allocation7 + $0x30] sm:$0xf]
    %v231 = vld [vmem:[#allocation7 + $0x34] sm:$0xf]
    %v232 = vld [vmem:[#allocation7 + $0x38] sm:$0xf]
    %v233 = vld [vmem:[#allocation7 + $0x3c] sm:$0xf]
    %v234 = vld [vmem:[%s4] sm:$0x1]
    %v236 = vlaneseq
    %v237 = vshrl.u32 %v236, 7
    %v238 = vsub.s32 0, %v237
    %v239 = vrot.slane %v234, %v238
    %v257 = vunpack.c.l.b16 %v218
    %v258 = vunpack.c.l.b16 %v219
    %v259 = vunpack.c.l.b16 %v220
    %v260 = vunpack.c.l.b16 %v221
    %v261 = vunpack.c.l.b16 %v222
    %v262 = vunpack.c.l.b16 %v223
    %v263 = vunpack.c.l.b16 %v224
    %v264 = vunpack.c.l.b16 %v225
    %v265 = vunpack.c.l.b16 %v226
    %v266 = vunpack.c.l.b16 %v227
    %v267 = vunpack.c.l.b16 %v228
    %v268 = vunpack.c.l.b16 %v229
    %v269 = vunpack.c.l.b16 %v230
    %v270 = vunpack.c.l.b16 %v231
    %v271 = vunpack.c.l.b16 %v232
    %v272 = vunpack.c.l.b16 %v233
    %v273 = vpack.c.b16 %v258, %v257
    %v274 = vpack.c.b16 %v260, %v259
    %v275 = vpack.c.b16 %v262, %v261
    %v276 = vpack.c.b16 %v264, %v263
    %v277 = vpack.c.b16 %v266, %v265
    %v278 = vpack.c.b16 %v268, %v267
    %v279 = vpack.c.b16 %v270, %v269
    %v280 = vpack.c.b16 %v272, %v271
    %289 = vmatprep.subr.bf16.mxu0 0
    %290 = vmatpush1.bf16.msra.mxu0 %v273
    %291 = vmatprep.subr.bf16.mxu0 0
    %292 = vmatpush1.bf16.msra.mxu0 %v274
    %293 = vmatprep.subr.bf16.mxu0 0
    %294 = vmatpush1.bf16.msra.mxu0 %v275
    %295 = vmatprep.subr.bf16.mxu0 0
    %296 = vmatpush1.bf16.msra.mxu0 %v276
    %297 = vmatprep.subr.bf16.mxu0 0
    %298 = vmatpush1.bf16.msra.mxu0 %v277
    %299 = vmatprep.subr.bf16.mxu0 0
    %300 = vmatpush1.bf16.msra.mxu0 %v278
    %301 = vmatprep.subr.bf16.mxu0 0
    %302 = vmatpush1.bf16.msra.mxu0 %v279
    %303 = vmatprep.subr.bf16.mxu0 0
    %304 = vmatpush1.bf16.msra.mxu0 %v280
    %305 = vmatprep.subr.bf16.mxu0 0
    %306 = vmatpush1.bf16.msra.mxu0 0
    %307 = vmatprep.subr.bf16.mxu0 0
    %308 = vmatpush1.bf16.msra.mxu0 0
    %309 = vmatprep.subr.bf16.mxu0 0
    %310 = vmatpush1.bf16.msra.mxu0 0
    %311 = vmatprep.subr.bf16.mxu0 0
    %312 = vmatpush1.bf16.msra.mxu0 0
    %313 = vmatprep.subr.bf16.mxu0 0
    %314 = vmatpush1.bf16.msra.mxu0 0
    %315 = vmatprep.subr.bf16.mxu0 0
    %316 = vmatpush1.bf16.msra.mxu0 0
    %317 = vmatprep.subr.bf16.mxu0 0
    %318 = vmatpush1.bf16.msra.mxu0 0
    %319 = vmatprep.subr.bf16.mxu0 0
    %320 = vmatpush1.bf16.msra.mxu0 0
    %321 = vmatprep.mubr.bf16.mxu0 0
    %322 = vmatmul.mubr.bf16.gmra.mrb[0].mxu0 %v217
    %v323 = vpop.f32.mrb[0].mxu0
    %v324 = vadd.f32 %v239, %v323
    %v325 = vpop.f32.mrb[0].mxu0
    %v326 = vpop.f32.mrb[0].mxu0
    %v327 = vpop.f32.mrb[0].mxu0
    %328 = vdwg.mxu0
    %v329 = vmax.f32 %v324, 0.0
    %v330 = vpack.c.bf16 %v329, %v329
    %v331 = vld [vmem:[#allocation8] sm:$0xf]
    %v332 = vld [vmem:[#allocation8 + $0x4] sm:$0xf]
    %v333 = vld [vmem:[#allocation8 + $0x8] sm:$0xf]
    %v334 = vld [vmem:[#allocation8 + $0xc] sm:$0xf]
    %v335 = vld [vmem:[#allocation8 + $0x10] sm:$0xf]
    %v336 = vld [vmem:[#allocation8 + $0x14] sm:$0xf]
    %v337 = vld [vmem:[#allocation8 + $0x18] sm:$0xf]
    %v338 = vld [vmem:[#allocation8 + $0x1c] sm:$0xf]
    %v339 = vld [vmem:[#allocation8 + $0x20] sm:$0xf]
    %v340 = vld [vmem:[#allocation8 + $0x24] sm:$0xf]
    %v341 = vld [vmem:[#allocation8 + $0x28] sm:$0xf]
    %v342 = vld [vmem:[#allocation8 + $0x2c] sm:$0xf]
    %v343 = vld [vmem:[#allocation8 + $0x30] sm:$0xf]
    %v344 = vld [vmem:[#allocation8 + $0x34] sm:$0xf]
    %v345 = vld [vmem:[#allocation8 + $0x38] sm:$0xf]
    %v346 = vld [vmem:[#allocation8 + $0x3c] sm:$0xf]
    %v347 = vld [vmem:[%s6] sm:$0x1]
    %v349 = vlaneseq
    %v350 = vshrl.u32 %v349, 7
    %v351 = vsub.s32 0, %v350
    %v352 = vrot.slane %v347, %v351
    %v370 = vunpack.c.l.b16 %v331
    %v371 = vunpack.c.l.b16 %v332
    %v372 = vunpack.c.l.b16 %v333
    %v373 = vunpack.c.l.b16 %v334
    %v374 = vunpack.c.l.b16 %v335
    %v375 = vunpack.c.l.b16 %v336
    %v376 = vunpack.c.l.b16 %v337
    %v377 = vunpack.c.l.b16 %v338
    %v378 = vunpack.c.l.b16 %v339
    %v379 = vunpack.c.l.b16 %v340
    %v380 = vunpack.c.l.b16 %v341
    %v381 = vunpack.c.l.b16 %v342
    %v382 = vunpack.c.l.b16 %v343
    %v383 = vunpack.c.l.b16 %v344
    %v384 = vunpack.c.l.b16 %v345
    %v385 = vunpack.c.l.b16 %v346
    %v386 = vpack.c.b16 %v371, %v370
    %v387 = vpack.c.b16 %v373, %v372
    %v388 = vpack.c.b16 %v375, %v374
    %v389 = vpack.c.b16 %v377, %v376
    %v390 = vpack.c.b16 %v379, %v378
    %v391 = vpack.c.b16 %v381, %v380
    %v392 = vpack.c.b16 %v383, %v382
    %v393 = vpack.c.b16 %v385, %v384
    %402 = vmatprep.subr.bf16.mxu0 0
    %403 = vmatpush1.bf16.msra.mxu0 %v386
    %404 = vmatprep.subr.bf16.mxu0 0
    %405 = vmatpush1.bf16.msra.mxu0 %v387
    %406 = vmatprep.subr.bf16.mxu0 0
    %407 = vmatpush1.bf16.msra.mxu0 %v388
    %408 = vmatprep.subr.bf16.mxu0 0
    %409 = vmatpush1.bf16.msra.mxu0 %v389
    %410 = vmatprep.subr.bf16.mxu0 0
    %411 = vmatpush1.bf16.msra.mxu0 %v390
    %412 = vmatprep.subr.bf16.mxu0 0
    %413 = vmatpush1.bf16.msra.mxu0 %v391
    %414 = vmatprep.subr.bf16.mxu0 0
    %415 = vmatpush1.bf16.msra.mxu0 %v392
    %416 = vmatprep.subr.bf16.mxu0 0
    %417 = vmatpush1.bf16.msra.mxu0 %v393
    %418 = vmatprep.subr.bf16.mxu0 0
    %419 = vmatpush1.bf16.msra.mxu0 0
    %420 = vmatprep.subr.bf16.mxu0 0
    %421 = vmatpush1.bf16.msra.mxu0 0
    %422 = vmatprep.subr.bf16.mxu0 0
    %423 = vmatpush1.bf16.msra.mxu0 0
    %424 = vmatprep.subr.bf16.mxu0 0
    %425 = vmatpush1.bf16.msra.mxu0 0
    %426 = vmatprep.subr.bf16.mxu0 0
    %427 = vmatpush1.bf16.msra.mxu0 0
    %428 = vmatprep.subr.bf16.mxu0 0
    %429 = vmatpush1.bf16.msra.mxu0 0
    %430 = vmatprep.subr.bf16.mxu0 0
    %431 = vmatpush1.bf16.msra.mxu0 0
    %432 = vmatprep.subr.bf16.mxu0 0
    %433 = vmatpush1.bf16.msra.mxu0 0
    %434 = vmatprep.mubr.bf16.mxu0 0
    %435 = vmatmul.mubr.bf16.gmra.mrb[0].mxu0 %v330
    %v436 = vpop.f32.mrb[0].mxu0
    %v437 = vadd.f32 %v352, %v436
    %v438 = vpop.f32.mrb[0].mxu0
    %v439 = vpop.f32.mrb[0].mxu0
    %v440 = vpop.f32.mrb[0].mxu0
    %441 = vdwg.mxu0
    %v442 = vmax.f32 %v437, 0.0
    %v443 = vpack.c.bf16 %v442, %v442
    %v444 = vld [vmem:[#allocation10] sm:$0xf]
    %v445 = vld [vmem:[#allocation10 + $0x4] sm:$0xf]
    %v446 = vld [vmem:[#allocation10 + $0x8] sm:$0xf]
    %v447 = vld [vmem:[#allocation10 + $0xc] sm:$0xf]
    %v448 = vld [vmem:[#allocation10 + $0x10] sm:$0xf]
    %v449 = vld [vmem:[#allocation10 + $0x14] sm:$0xf]
    %v450 = vld [vmem:[#allocation10 + $0x18] sm:$0xf]
    %v451 = vld [vmem:[#allocation10 + $0x1c] sm:$0xf]
    %v452 = vld [vmem:[#allocation10 + $0x20] sm:$0xf]
    %v453 = vld [vmem:[#allocation10 + $0x24] sm:$0xf]
    %v454 = vld [vmem:[#allocation10 + $0x28] sm:$0xf]
    %v455 = vld [vmem:[#allocation10 + $0x2c] sm:$0xf]
    %v456 = vld [vmem:[#allocation10 + $0x30] sm:$0xf]
    %v457 = vld [vmem:[#allocation10 + $0x34] sm:$0xf]
    %v458 = vld [vmem:[#allocation10 + $0x38] sm:$0xf]
    %v459 = vld [vmem:[#allocation10 + $0x3c] sm:$0xf]
    %v460 = vld [vmem:[%s8] sm:$0x1]
    %v462 = vlaneseq
    %v463 = vshrl.u32 %v462, 7
    %v464 = vsub.s32 0, %v463
    %v465 = vrot.slane %v460, %v464
    %v483 = vunpack.c.l.b16 %v444
    %v484 = vunpack.c.l.b16 %v445
    %v485 = vunpack.c.l.b16 %v446
    %v486 = vunpack.c.l.b16 %v447
    %v487 = vunpack.c.l.b16 %v448
    %v488 = vunpack.c.l.b16 %v449
    %v489 = vunpack.c.l.b16 %v450
    %v490 = vunpack.c.l.b16 %v451
    %v491 = vunpack.c.l.b16 %v452
    %v492 = vunpack.c.l.b16 %v453
    %v493 = vunpack.c.l.b16 %v454
    %v494 = vunpack.c.l.b16 %v455
    %v495 = vunpack.c.l.b16 %v456
    %v496 = vunpack.c.l.b16 %v457
    %v497 = vunpack.c.l.b16 %v458
    %v498 = vunpack.c.l.b16 %v459
    %v499 = vpack.c.b16 %v484, %v483
    %v500 = vpack.c.b16 %v486, %v485
    %v501 = vpack.c.b16 %v488, %v487
    %v502 = vpack.c.b16 %v490, %v489
    %v503 = vpack.c.b16 %v492, %v491
    %v504 = vpack.c.b16 %v494, %v493
    %v505 = vpack.c.b16 %v496, %v495
    %v506 = vpack.c.b16 %v498, %v497
    %515 = vmatprep.subr.bf16.mxu0 0
    %516 = vmatpush1.bf16.msra.mxu0 %v499
    %517 = vmatprep.subr.bf16.mxu0 0
    %518 = vmatpush1.bf16.msra.mxu0 %v500
    %519 = vmatprep.subr.bf16.mxu0 0
    %520 = vmatpush1.bf16.msra.mxu0 %v501
    %521 = vmatprep.subr.bf16.mxu0 0
    %522 = vmatpush1.bf16.msra.mxu0 %v502
    %523 = vmatprep.subr.bf16.mxu0 0
    %524 = vmatpush1.bf16.msra.mxu0 %v503
    %525 = vmatprep.subr.bf16.mxu0 0
    %526 = vmatpush1.bf16.msra.mxu0 %v504
    %527 = vmatprep.subr.bf16.mxu0 0
    %528 = vmatpush1.bf16.msra.mxu0 %v505
    %529 = vmatprep.subr.bf16.mxu0 0
    %530 = vmatpush1.bf16.msra.mxu0 %v506
    %531 = vmatprep.subr.bf16.mxu0 0
    %532 = vmatpush1.bf16.msra.mxu0 0
    %533 = vmatprep.subr.bf16.mxu0 0
    %534 = vmatpush1.bf16.msra.mxu0 0
    %535 = vmatprep.subr.bf16.mxu0 0
    %536 = vmatpush1.bf16.msra.mxu0 0
    %537 = vmatprep.subr.bf16.mxu0 0
    %538 = vmatpush1.bf16.msra.mxu0 0
    %539 = vmatprep.subr.bf16.mxu0 0
    %540 = vmatpush1.bf16.msra.mxu0 0
    %541 = vmatprep.subr.bf16.mxu0 0
    %542 = vmatpush1.bf16.msra.mxu0 0
    %543 = vmatprep.subr.bf16.mxu0 0
    %544 = vmatpush1.bf16.msra.mxu0 0
    %545 = vmatprep.subr.bf16.mxu0 0
    %546 = vmatpush1.bf16.msra.mxu0 0
    %547 = vmatprep.mubr.bf16.mxu0 0
    %548 = vmatmul.mubr.bf16.gmra.mrb[0].mxu0 %v443
    %v549 = vpop.f32.mrb[0].mxu0
    %v550 = vadd.f32 %v465, %v549
    %v551 = vpop.f32.mrb[0].mxu0
    %v552 = vpop.f32.mrb[0].mxu0
    %v553 = vpop.f32.mrb[0].mxu0
    %554 = vdwg.mxu0
    %v555 = vld [vmem:[%s9] sm:$0x1]
    %v557 = vlaneseq
    %v558 = vshrl.u32 %v557, 7
    %v559 = vsub.s32 0, %v558
    %v560 = vrot.slane %v555, %v559
    %vm562 = vcmp.ne.f32.partialorder %v560, 0.0
    %v563 = vsel %vm562, %v103, %v550
    %564 = vst [vmem:[#allocation11] sm:$0xff] %v563
    // Predicated region
    $region62: #{tpu_custom_call.1} parent=1 // pred_check
      _
    $region63: #{tpu_custom_call.1} parent=1 // pred_check_branch
      %566 = sbr.rel (0) target = $region65
    $region64: #{tpu_custom_call.1} parent=1 // pred_region
      %s568 = ssub.s32 128, 128
      %569 = vsyncadd [#allocation4], %s568
      %s571 = sshll.u32 [#allocation11], 4
      %s572 = int_to_ptr.vmem [resolvable:$true] %s571
      %574 = dma.vmem_to_hbm [thread:$0]  %s572, 128, %s10, [#allocation4]
    $region65: #{tpu_custom_call.1} parent=1 // pred_fallthru
      _
    // Predicated region
    $region66: #{tpu_custom_call.1} parent=1 // pred_check
      _
    $region67: #{tpu_custom_call.1} parent=1 // pred_check_branch
      %576 = sbr.rel (0) target = $region69
    $region68: #{tpu_custom_call.1} parent=1 // pred_region
      %577 = dma.done [#allocation4], 128
    $region69: #{tpu_custom_call.1} parent=1 // pred_fallthru
      _
    %578 = vsyncpa [#allocation3], 1
    %579 = vsyncpa [#allocation6], 1
    %580 = vsyncpa [#allocation9], 1
    %581 = vsyncpa [#allocation4], 1

// kernel: tpu_custom_call.1
$region0: #{tpu_custom_call.1}
  #allocation0 [shape = 'u32[]', space=smem, size = 0x4, offset = 0x4, fixed_abs, tag = 'smem constant byte address 0x4 - core index']
  #allocation1 [shape = 'u32[144,128]{1,0:T(1,128)}', space=vmem, size = 0x12000, scoped, tag = 'internal scratch']
  %s0 = inlined_call_operand.hbm [shape: f32[8,128], index: 0, kind: input, shape index: {}]
  %s1 = inlined_call_operand.hbm [shape: bf16[128,128], index: 1, kind: input, shape index: {}]
  %s2 = inlined_call_operand.vmem [shape: f32[1,128], index: 2, kind: input, shape index: {}]
  %s3 = inlined_call_operand.hbm [shape: bf16[128,128], index: 3, kind: input, shape index: {}]
  %s4 = inlined_call_operand.vmem [shape: f32[1,128], index: 4, kind: input, shape index: {}]
  %s5 = inlined_call_operand.hbm [shape: bf16[128,128], index: 5, kind: input, shape index: {}]
  %s6 = inlined_call_operand.vmem [shape: f32[1,128], index: 6, kind: input, shape index: {}]
  %s7 = inlined_call_operand.hbm [shape: bf16[128,128], index: 7, kind: input, shape index: {}]
  %s8 = inlined_call_operand.vmem [shape: f32[1,128], index: 8, kind: input, shape index: {}]
  %s9 = inlined_call_operand.vmem [shape: f32[1,128], index: 9, kind: input, shape index: {}]
  %s10 = inlined_call_operand.hbm [shape: f32[8,128], index: 10, kind: output, shape index: {}]
  %s11 = sld [smem:[#allocation0]]
  $region70: #{tpu_custom_call.1} parent=0
    _
  %s13 = ssub.s32 1, %s11
  %s14 = scalar_select 0, %s13, %s11
  $region1: #{tpu_custom_call.1} parent=0
    #allocation2 [shape = 'u8[4096]{0}', space=vmem, size = 0x1000, scoped, tag = 'input window, operand 0, single buffered']
    #allocation3 [shape = 's32[1]{0}', space=sflag, size = 0x4, scoped, tag = 'scoped memory for tpu_custom_call.1']
    #allocation4 [shape = 's32[1]{0}', space=sflag, size = 0x4, scoped, tag = 'scoped memory for tpu_custom_call.1']
    #allocation5 [shape = 'u8[32768]{0}', space=vmem, size = 0x8000, scoped, tag = 'input window, operand 1, single buffered']
    #allocation6 [shape = 's32[1]{0}', space=sflag, size = 0x4, scoped, tag = 'scoped memory for tpu_custom_call.1']
    #allocation7 [shape = 'u8[32768]{0}', space=vmem, size = 0x8000, scoped, tag = 'input window, operand 3, single buffered']
    #allocation8 [shape = 'u8[32768]{0}', space=vmem, size = 0x8000, scoped, tag = 'input window, operand 5, single buffered']
    #allocation9 [shape = 's32[1]{0}', space=sflag, size = 0x4, scoped, tag = 'scoped memory for tpu_custom_call.1']
    #allocation10 [shape = 'u8[32768]{0}', space=vmem, size = 0x8000, scoped, tag = 'input window, operand 7, single buffered']
    #allocation11 [shape = 'u8[4096]{0}', space=vmem, size = 0x1000, scoped, tag = 'output window, operand 0, single buffered']
    %15 = vsyncpa [#allocation3], 0
    %16 = vsyncpa [#allocation6], 0
    %17 = vsyncpa [#allocation9], 0
    %18 = vsyncpa [#allocation4], 0
    // Predicated region
    $region2: #{tpu_custom_call.1} parent=1 // pred_check
      _
    $region3: #{tpu_custom_call.1} parent=1 // pred_check_branch
      %20 = sbr.rel (0) target = $region5
    $region4: #{tpu_custom_call.1} parent=1 // pred_region
      %s22 = ssub.s32 128, 128
      %23 = vsyncadd [#allocation3], %s22
      %s25 = sshll.u32 [#allocation2], 4
      %s26 = int_to_ptr.vmem [resolvable:$true] %s25
      %28 = dma.hbm_to_vmem [thread:$0]  %s0, 128, %s26, [#allocation3]
    $region5: #{tpu_custom_call.1} parent=1 // pred_fallthru
      _
    // Predicated region
    $region6: #{tpu_custom_call.1} parent=1 // pred_check
      _
    $region7: #{tpu_custom_call.1} parent=1 // pred_check_branch
      %30 = sbr.rel (0) target = $region9
    $region8: #{tpu_custom_call.1} parent=1 // pred_region
      %s32 = ssub.s32 1024, 1024
      %33 = vsyncadd [#allocation6], %s32
      %s34 = sshll.u32 [#allocation5], 4
      %s35 = int_to_ptr.vmem [resolvable:$true] %s34
      %40 = dma.hbm_to_vmem [thread:$0]  %s1, 1024, %s35, [#allocation6], 64, 64, 4
    $region9: #{tpu_custom_call.1} parent=1 // pred_fallthru
      _
    // Predicated region
    $region10: #{tpu_custom_call.1} parent=1 // pred_check
      _
    $region11: #{tpu_custom_call.1} parent=1 // pred_check_branch
      %42 = sbr.rel (0) target = $region13
    $region12: #{tpu_custom_call.1} parent=1 // pred_region
      _
    $region13: #{tpu_custom_call.1} parent=1 // pred_fallthru
      _
    // Predicated region
    $region14: #{tpu_custom_call.1} parent=1 // pred_check
      _
    $region15: #{tpu_custom_call.1} parent=1 // pred_check_branch
      %44 = sbr.rel (0) target = $region17
    $region16: #{tpu_custom_call.1} parent=1 // pred_region
      %s46 = ssub.s32 1024, 1024
      %47 = vsyncadd [#allocation6], %s46
      %s48 = sshll.u32 [#allocation7], 4
      %s49 = int_to_ptr.vmem [resolvable:$true] %s48
      %54 = dma.hbm_to_vmem [thread:$0]  %s3, 1024, %s49, [#allocation6], 64, 64, 4
    $region17: #{tpu_custom_call.1} parent=1 // pred_fallthru
      _
    // Predicated region
    $region18: #{tpu_custom_call.1} parent=1 // pred_check
      _
    $region19: #{tpu_custom_call.1} parent=1 // pred_check_branch
      %56 = sbr.rel (0) target = $region21
    $region20: #{tpu_custom_call.1} parent=1 // pred_region
      _
    $region21: #{tpu_custom_call.1} parent=1 // pred_fallthru
      _
    // Predicated region
    $region22: #{tpu_custom_call.1} parent=1 // pred_check
      _
    $region23: #{tpu_custom_call.1} parent=1 // pred_check_branch
      %58 = sbr.rel (0) target = $region25
    $region24: #{tpu_custom_call.1} parent=1 // pred_region
      %s60 = ssub.s32 1024, 1024
      %61 = vsyncadd [#allocation9], %s60
      %s62 = sshll.u32 [#allocation8], 4
      %s63 = int_to_ptr.vmem [resolvable:$true] %s62
      %68 = dma.hbm_to_vmem [thread:$0]  %s5, 1024, %s63, [#allocation9], 64, 64, 4
    $region25: #{tpu_custom_call.1} parent=1 // pred_fallthru
      _
    // Predicated region
    $region26: #{tpu_custom_call.1} parent=1 // pred_check
      _
    $region27: #{tpu_custom_call.1} parent=1 // pred_check_branch
      %70 = sbr.rel (0) target = $region29
    $region28: #{tpu_custom_call.1} parent=1 // pred_region
      _
    $region29: #{tpu_custom_call.1} parent=1 // pred_fallthru
      _
    // Predicated region
    $region30: #{tpu_custom_call.1} parent=1 // pred_check
      _
    $region31: #{tpu_custom_call.1} parent=1 // pred_check_branch
      %72 = sbr.rel (0) target = $region33
    $region32: #{tpu_custom_call.1} parent=1 // pred_region
      %s74 = ssub.s32 1024, 1024
      %75 = vsyncadd [#allocation9], %s74
      %s76 = sshll.u32 [#allocation10], 4
      %s77 = int_to_ptr.vmem [resolvable:$true] %s76
      %82 = dma.hbm_to_vmem [thread:$0]  %s7, 1024, %s77, [#allocation9], 64, 64, 4
    $region33: #{tpu_custom_call.1} parent=1 // pred_fallthru
      _
    // Predicated region
    $region34: #{tpu_custom_call.1} parent=1 // pred_check
      _
    $region35: #{tpu_custom_call.1} parent=1 // pred_check_branch
      %84 = sbr.rel (0) target = $region37
    $region36: #{tpu_custom_call.1} parent=1 // pred_region
      _
    $region37: #{tpu_custom_call.1} parent=1 // pred_fallthru
      _
    // Predicated region
    $region38: #{tpu_custom_call.1} parent=1 // pred_check
      _
    $region39: #{tpu_custom_call.1} parent=1 // pred_check_branch
      %86 = sbr.rel (0) target = $region41
    $region40: #{tpu_custom_call.1} parent=1 // pred_region
      _
    $region41: #{tpu_custom_call.1} parent=1 // pred_fallthru
      _
    // Predicated region
    $region42: #{tpu_custom_call.1} parent=1 // pred_check
      _
    $region43: #{tpu_custom_call.1} parent=1 // pred_check_branch
      %88 = sbr.rel (0) target = $region45
    $region44: #{tpu_custom_call.1} parent=1 // pred_region
      %89 = dma.done [#allocation3], 128
    $region45: #{tpu_custom_call.1} parent=1 // pred_fallthru
      _
    // Predicated region
    $region46: #{tpu_custom_call.1} parent=1 // pred_check
      _
    $region47: #{tpu_custom_call.1} parent=1 // pred_check_branch
      %91 = sbr.rel (0) target = $region49
    $region48: #{tpu_custom_call.1} parent=1 // pred_region
      %92 = dma.done [#allocation6], 1024
    $region49: #{tpu_custom_call.1} parent=1 // pred_fallthru
      _
    // Predicated region
    $region50: #{tpu_custom_call.1} parent=1 // pred_check
      _
    $region51: #{tpu_custom_call.1} parent=1 // pred_check_branch
      %94 = sbr.rel (0) target = $region53
    $region52: #{tpu_custom_call.1} parent=1 // pred_region
      %95 = dma.done [#allocation6], 1024
    $region53: #{tpu_custom_call.1} parent=1 // pred_fallthru
      _
    // Predicated region
    $region54: #{tpu_custom_call.1} parent=1 // pred_check
      _
    $region55: #{tpu_custom_call.1} parent=1 // pred_check_branch
      %97 = sbr.rel (0) target = $region57
    $region56: #{tpu_custom_call.1} parent=1 // pred_region
      %98 = dma.done [#allocation9], 1024
    $region57: #{tpu_custom_call.1} parent=1 // pred_fallthru
      _
    // Predicated region
    $region58: #{tpu_custom_call.1} parent=1 // pred_check
      _
    $region59: #{tpu_custom_call.1} parent=1 // pred_check_branch
      %100 = sbr.rel (0) target = $region61
    $region60: #{tpu_custom_call.1} parent=1 // pred_region
      %101 = dma.done [#allocation9], 1024
    $region61: #{tpu_custom_call.1} parent=1 // pred_fallthru
      _
    %v103 = vld [vmem:[#allocation2] sm:$0xff]
    %v104 = vpack.c.bf16 %v103, %v103
    %v105 = vld [vmem:[#allocation5] sm:$0xf]
    %v106 = vld [vmem:[#allocation5 + $0x4] sm:$0xf]
    %v107 = vld [vmem:[#allocation5 + $0x8] sm:$0xf]
    %v108 = vld [vmem:[#allocation5 + $0xc] sm:$0xf]
    %v109 = vld [vmem:[#allocation5 + $0x10] sm:$0xf]
    %v110 = vld [vmem:[#allocation5 + $0x14] sm:$0xf]
    %v111 = vld [vmem:[#allocation5 + $0x18] sm:$0xf]
    %v112 = vld [vmem:[#allocation5 + $0x1c] sm:$0xf]
    %v113 = vld [vmem:[#allocation5 + $0x20] sm:$0xf]
    %v114 = vld [vmem:[#allocation5 + $0x24] sm:$0xf]
    %v115 = vld [vmem:[#allocation5 + $0x28] sm:$0xf]
    %v116 = vld [vmem:[#allocation5 + $0x2c] sm:$0xf]
    %v117 = vld [vmem:[#allocation5 + $0x30] sm:$0xf]
    %v118 = vld [vmem:[#allocation5 + $0x34] sm:$0xf]
    %v119 = vld [vmem:[#allocation5 + $0x38] sm:$0xf]
    %v120 = vld [vmem:[#allocation5 + $0x3c] sm:$0xf]
    %v121 = vld [vmem:[%s2] sm:$0x1]
    %v123 = vlaneseq
    %v124 = vshrl.u32 %v123, 7
    %v125 = vsub.s32 0, %v124
    %v126 = vrot.slane %v121, %v125
    %v144 = vunpack.c.l.b16 %v105
    %v145 = vunpack.c.l.b16 %v106
    %v146 = vunpack.c.l.b16 %v107
    %v147 = vunpack.c.l.b16 %v108
    %v148 = vunpack.c.l.b16 %v109
    %v149 = vunpack.c.l.b16 %v110
    %v150 = vunpack.c.l.b16 %v111
    %v151 = vunpack.c.l.b16 %v112
    %v152 = vunpack.c.l.b16 %v113
    %v153 = vunpack.c.l.b16 %v114
    %v154 = vunpack.c.l.b16 %v115
    %v155 = vunpack.c.l.b16 %v116
    %v156 = vunpack.c.l.b16 %v117
    %v157 = vunpack.c.l.b16 %v118
    %v158 = vunpack.c.l.b16 %v119
    %v159 = vunpack.c.l.b16 %v120
    %v160 = vpack.c.b16 %v145, %v144
    %v161 = vpack.c.b16 %v147, %v146
    %v162 = vpack.c.b16 %v149, %v148
    %v163 = vpack.c.b16 %v151, %v150
    %v164 = vpack.c.b16 %v153, %v152
    %v165 = vpack.c.b16 %v155, %v154
    %v166 = vpack.c.b16 %v157, %v156
    %v167 = vpack.c.b16 %v159, %v158
    %176 = vmatprep.subr.bf16.mxu0 0
    %177 = vmatpush1.bf16.msra.mxu0 %v160
    %178 = vmatprep.subr.bf16.mxu0 0
    %179 = vmatpush1.bf16.msra.mxu0 %v161
    %180 = vmatprep.subr.bf16.mxu0 0
    %181 = vmatpush1.bf16.msra.mxu0 %v162
    %182 = vmatprep.subr.bf16.mxu0 0
    %183 = vmatpush1.bf16.msra.mxu0 %v163
    %184 = vmatprep.subr.bf16.mxu0 0
    %185 = vmatpush1.bf16.msra.mxu0 %v164
    %186 = vmatprep.subr.bf16.mxu0 0
    %187 = vmatpush1.bf16.msra.mxu0 %v165
    %188 = vmatprep.subr.bf16.mxu0 0
    %189 = vmatpush1.bf16.msra.mxu0 %v166
    %190 = vmatprep.subr.bf16.mxu0 0
    %191 = vmatpush1.bf16.msra.mxu0 %v167
    %192 = vmatprep.subr.bf16.mxu0 0
    %193 = vmatpush1.bf16.msra.mxu0 0
    %194 = vmatprep.subr.bf16.mxu0 0
    %195 = vmatpush1.bf16.msra.mxu0 0
    %196 = vmatprep.subr.bf16.mxu0 0
    %197 = vmatpush1.bf16.msra.mxu0 0
    %198 = vmatprep.subr.bf16.mxu0 0
    %199 = vmatpush1.bf16.msra.mxu0 0
    %200 = vmatprep.subr.bf16.mxu0 0
    %201 = vmatpush1.bf16.msra.mxu0 0
    %202 = vmatprep.subr.bf16.mxu0 0
    %203 = vmatpush1.bf16.msra.mxu0 0
    %204 = vmatprep.subr.bf16.mxu0 0
    %205 = vmatpush1.bf16.msra.mxu0 0
    %206 = vmatprep.subr.bf16.mxu0 0
    %207 = vmatpush1.bf16.msra.mxu0 0
    %208 = vmatprep.mubr.bf16.mxu0 0
    %209 = vmatmul.mubr.bf16.gmra.mrb[0].mxu0 %v104
    %v210 = vpop.f32.mrb[0].mxu0
    %v211 = vadd.f32 %v126, %v210
    %v212 = vpop.f32.mrb[0].mxu0
    %v213 = vpop.f32.mrb[0].mxu0
    %v214 = vpop.f32.mrb[0].mxu0
    %215 = vdwg.mxu0
    %v216 = vmax.f32 %v211, 0.0
    %v217 = vpack.c.bf16 %v216, %v216
    %v218 = vld [vmem:[#allocation7] sm:$0xf]
    %v219 = vld [vmem:[#allocation7 + $0x4] sm:$0xf]
    %v220 = vld [vmem:[#allocation7 + $0x8] sm:$0xf]
    %v221 = vld [vmem:[#allocation7 + $0xc] sm:$0xf]
    %v222 = vld [vmem:[#allocation7 + $0x10] sm:$0xf]
    %v223 = vld [vmem:[#allocation7 + $0x14] sm:$0xf]
    %v224 = vld [vmem:[#allocation7 + $0x18] sm:$0xf]
    %v225 = vld [vmem:[#allocation7 + $0x1c] sm:$0xf]
    %v226 = vld [vmem:[#allocation7 + $0x20] sm:$0xf]
    %v227 = vld [vmem:[#allocation7 + $0x24] sm:$0xf]
    %v228 = vld [vmem:[#allocation7 + $0x28] sm:$0xf]
    %v229 = vld [vmem:[#allocation7 + $0x2c] sm:$0xf]
    %v230 = vld [vmem:[#allocation7 + $0x30] sm:$0xf]
    %v231 = vld [vmem:[#allocation7 + $0x34] sm:$0xf]
    %v232 = vld [vmem:[#allocation7 + $0x38] sm:$0xf]
    %v233 = vld [vmem:[#allocation7 + $0x3c] sm:$0xf]
    %v234 = vld [vmem:[%s4] sm:$0x1]
    %v236 = vlaneseq
    %v237 = vshrl.u32 %v236, 7
    %v238 = vsub.s32 0, %v237
    %v239 = vrot.slane %v234, %v238
    %v257 = vunpack.c.l.b16 %v218
    %v258 = vunpack.c.l.b16 %v219
    %v259 = vunpack.c.l.b16 %v220
    %v260 = vunpack.c.l.b16 %v221
    %v261 = vunpack.c.l.b16 %v222
    %v262 = vunpack.c.l.b16 %v223
    %v263 = vunpack.c.l.b16 %v224
    %v264 = vunpack.c.l.b16 %v225
    %v265 = vunpack.c.l.b16 %v226
    %v266 = vunpack.c.l.b16 %v227
    %v267 = vunpack.c.l.b16 %v228
    %v268 = vunpack.c.l.b16 %v229
    %v269 = vunpack.c.l.b16 %v230
    %v270 = vunpack.c.l.b16 %v231
    %v271 = vunpack.c.l.b16 %v232
    %v272 = vunpack.c.l.b16 %v233
    %v273 = vpack.c.b16 %v258, %v257
    %v274 = vpack.c.b16 %v260, %v259
    %v275 = vpack.c.b16 %v262, %v261
    %v276 = vpack.c.b16 %v264, %v263
    %v277 = vpack.c.b16 %v266, %v265
    %v278 = vpack.c.b16 %v268, %v267
    %v279 = vpack.c.b16 %v270, %v269
    %v280 = vpack.c.b16 %v272, %v271
    %289 = vmatprep.subr.bf16.mxu0 0
    %290 = vmatpush1.bf16.msra.mxu0 %v273
    %291 = vmatprep.subr.bf16.mxu0 0
    %292 = vmatpush1.bf16.msra.mxu0 %v274
    %293 = vmatprep.subr.bf16.mxu0 0
    %294 = vmatpush1.bf16.msra.mxu0 %v275
    %295 = vmatprep.subr.bf16.mxu0 0
    %296 = vmatpush1.bf16.msra.mxu0 %v276
    %297 = vmatprep.subr.bf16.mxu0 0
    %298 = vmatpush1.bf16.msra.mxu0 %v277
    %299 = vmatprep.subr.bf16.mxu0 0
    %300 = vmatpush1.bf16.msra.mxu0 %v278
    %301 = vmatprep.subr.bf16.mxu0 0
    %302 = vmatpush1.bf16.msra.mxu0 %v279
    %303 = vmatprep.subr.bf16.mxu0 0
    %304 = vmatpush1.bf16.msra.mxu0 %v280
    %305 = vmatprep.subr.bf16.mxu0 0
    %306 = vmatpush1.bf16.msra.mxu0 0
    %307 = vmatprep.subr.bf16.mxu0 0
    %308 = vmatpush1.bf16.msra.mxu0 0
    %309 = vmatprep.subr.bf16.mxu0 0
    %310 = vmatpush1.bf16.msra.mxu0 0
    %311 = vmatprep.subr.bf16.mxu0 0
    %312 = vmatpush1.bf16.msra.mxu0 0
    %313 = vmatprep.subr.bf16.mxu0 0
    %314 = vmatpush1.bf16.msra.mxu0 0
    %315 = vmatprep.subr.bf16.mxu0 0
    %316 = vmatpush1.bf16.msra.mxu0 0
    %317 = vmatprep.subr.bf16.mxu0 0
    %318 = vmatpush1.bf16.msra.mxu0 0
    %319 = vmatprep.subr.bf16.mxu0 0
    %320 = vmatpush1.bf16.msra.mxu0 0
    %321 = vmatprep.mubr.bf16.mxu0 0
    %322 = vmatmul.mubr.bf16.gmra.mrb[0].mxu0 %v217
    %v323 = vpop.f32.mrb[0].mxu0
    %v324 = vadd.f32 %v239, %v323
    %v325 = vpop.f32.mrb[0].mxu0
    %v326 = vpop.f32.mrb[0].mxu0
    %v327 = vpop.f32.mrb[0].mxu0
    %328 = vdwg.mxu0
    %v329 = vmax.f32 %v324, 0.0
    %v330 = vpack.c.bf16 %v329, %v329
    %v331 = vld [vmem:[#allocation8] sm:$0xf]
    %v332 = vld [vmem:[#allocation8 + $0x4] sm:$0xf]
    %v333 = vld [vmem:[#allocation8 + $0x8] sm:$0xf]
    %v334 = vld [vmem:[#allocation8 + $0xc] sm:$0xf]
    %v335 = vld [vmem:[#allocation8 + $0x10] sm:$0xf]
    %v336 = vld [vmem:[#allocation8 + $0x14] sm:$0xf]
    %v337 = vld [vmem:[#allocation8 + $0x18] sm:$0xf]
    %v338 = vld [vmem:[#allocation8 + $0x1c] sm:$0xf]
    %v339 = vld [vmem:[#allocation8 + $0x20] sm:$0xf]
    %v340 = vld [vmem:[#allocation8 + $0x24] sm:$0xf]
    %v341 = vld [vmem:[#allocation8 + $0x28] sm:$0xf]
    %v342 = vld [vmem:[#allocation8 + $0x2c] sm:$0xf]
    %v343 = vld [vmem:[#allocation8 + $0x30] sm:$0xf]
    %v344 = vld [vmem:[#allocation8 + $0x34] sm:$0xf]
    %v345 = vld [vmem:[#allocation8 + $0x38] sm:$0xf]
    %v346 = vld [vmem:[#allocation8 + $0x3c] sm:$0xf]
    %v347 = vld [vmem:[%s6] sm:$0x1]
    %v349 = vlaneseq
    %v350 = vshrl.u32 %v349, 7
    %v351 = vsub.s32 0, %v350
    %v352 = vrot.slane %v347, %v351
    %v370 = vunpack.c.l.b16 %v331
    %v371 = vunpack.c.l.b16 %v332
    %v372 = vunpack.c.l.b16 %v333
    %v373 = vunpack.c.l.b16 %v334
    %v374 = vunpack.c.l.b16 %v335
    %v375 = vunpack.c.l.b16 %v336
    %v376 = vunpack.c.l.b16 %v337
    %v377 = vunpack.c.l.b16 %v338
    %v378 = vunpack.c.l.b16 %v339
    %v379 = vunpack.c.l.b16 %v340
    %v380 = vunpack.c.l.b16 %v341
    %v381 = vunpack.c.l.b16 %v342
    %v382 = vunpack.c.l.b16 %v343
    %v383 = vunpack.c.l.b16 %v344
    %v384 = vunpack.c.l.b16 %v345
    %v385 = vunpack.c.l.b16 %v346
    %v386 = vpack.c.b16 %v371, %v370
    %v387 = vpack.c.b16 %v373, %v372
    %v388 = vpack.c.b16 %v375, %v374
    %v389 = vpack.c.b16 %v377, %v376
    %v390 = vpack.c.b16 %v379, %v378
    %v391 = vpack.c.b16 %v381, %v380
    %v392 = vpack.c.b16 %v383, %v382
    %v393 = vpack.c.b16 %v385, %v384
    %402 = vmatprep.subr.bf16.mxu0 0
    %403 = vmatpush1.bf16.msra.mxu0 %v386
    %404 = vmatprep.subr.bf16.mxu0 0
    %405 = vmatpush1.bf16.msra.mxu0 %v387
    %406 = vmatprep.subr.bf16.mxu0 0
    %407 = vmatpush1.bf16.msra.mxu0 %v388
    %408 = vmatprep.subr.bf16.mxu0 0
    %409 = vmatpush1.bf16.msra.mxu0 %v389
    %410 = vmatprep.subr.bf16.mxu0 0
    %411 = vmatpush1.bf16.msra.mxu0 %v390
    %412 = vmatprep.subr.bf16.mxu0 0
    %413 = vmatpush1.bf16.msra.mxu0 %v391
    %414 = vmatprep.subr.bf16.mxu0 0
    %415 = vmatpush1.bf16.msra.mxu0 %v392
    %416 = vmatprep.subr.bf16.mxu0 0
    %417 = vmatpush1.bf16.msra.mxu0 %v393
    %418 = vmatprep.subr.bf16.mxu0 0
    %419 = vmatpush1.bf16.msra.mxu0 0
    %420 = vmatprep.subr.bf16.mxu0 0
    %421 = vmatpush1.bf16.msra.mxu0 0
    %422 = vmatprep.subr.bf16.mxu0 0
    %423 = vmatpush1.bf16.msra.mxu0 0
    %424 = vmatprep.subr.bf16.mxu0 0
    %425 = vmatpush1.bf16.msra.mxu0 0
    %426 = vmatprep.subr.bf16.mxu0 0
    %427 = vmatpush1.bf16.msra.mxu0 0
    %428 = vmatprep.subr.bf16.mxu0 0
    %429 = vmatpush1.bf16.msra.mxu0 0
    %430 = vmatprep.subr.bf16.mxu0 0
    %431 = vmatpush1.bf16.msra.mxu0 0
    %432 = vmatprep.subr.bf16.mxu0 0
    %433 = vmatpush1.bf16.msra.mxu0 0
    %434 = vmatprep.mubr.bf16.mxu0 0
    %435 = vmatmul.mubr.bf16.gmra.mrb[0].mxu0 %v330
    %v436 = vpop.f32.mrb[0].mxu0
    %v437 = vadd.f32 %v352, %v436
    %v438 = vpop.f32.mrb[0].mxu0
    %v439 = vpop.f32.mrb[0].mxu0
    %v440 = vpop.f32.mrb[0].mxu0
    %441 = vdwg.mxu0
    %v442 = vmax.f32 %v437, 0.0
    %v443 = vpack.c.bf16 %v442, %v442
    %v444 = vld [vmem:[#allocation10] sm:$0xf]
    %v445 = vld [vmem:[#allocation10 + $0x4] sm:$0xf]
    %v446 = vld [vmem:[#allocation10 + $0x8] sm:$0xf]
    %v447 = vld [vmem:[#allocation10 + $0xc] sm:$0xf]
    %v448 = vld [vmem:[#allocation10 + $0x10] sm:$0xf]
    %v449 = vld [vmem:[#allocation10 + $0x14] sm:$0xf]
    %v450 = vld [vmem:[#allocation10 + $0x18] sm:$0xf]
    %v451 = vld [vmem:[#allocation10 + $0x1c] sm:$0xf]
    %v452 = vld [vmem:[#allocation10 + $0x20] sm:$0xf]
    %v453 = vld [vmem:[#allocation10 + $0x24] sm:$0xf]
    %v454 = vld [vmem:[#allocation10 + $0x28] sm:$0xf]
    %v455 = vld [vmem:[#allocation10 + $0x2c] sm:$0xf]
    %v456 = vld [vmem:[#allocation10 + $0x30] sm:$0xf]
    %v457 = vld [vmem:[#allocation10 + $0x34] sm:$0xf]
    %v458 = vld [vmem:[#allocation10 + $0x38] sm:$0xf]
    %v459 = vld [vmem:[#allocation10 + $0x3c] sm:$0xf]
    %v460 = vld [vmem:[%s8] sm:$0x1]
    %v462 = vlaneseq
    %v463 = vshrl.u32 %v462, 7
    %v464 = vsub.s32 0, %v463
    %v465 = vrot.slane %v460, %v464
    %v483 = vunpack.c.l.b16 %v444
    %v484 = vunpack.c.l.b16 %v445
    %v485 = vunpack.c.l.b16 %v446
    %v486 = vunpack.c.l.b16 %v447
    %v487 = vunpack.c.l.b16 %v448
    %v488 = vunpack.c.l.b16 %v449
    %v489 = vunpack.c.l.b16 %v450
    %v490 = vunpack.c.l.b16 %v451
    %v491 = vunpack.c.l.b16 %v452
    %v492 = vunpack.c.l.b16 %v453
    %v493 = vunpack.c.l.b16 %v454
    %v494 = vunpack.c.l.b16 %v455
    %v495 = vunpack.c.l.b16 %v456
    %v496 = vunpack.c.l.b16 %v457
    %v497 = vunpack.c.l.b16 %v458
    %v498 = vunpack.c.l.b16 %v459
    %v499 = vpack.c.b16 %v484, %v483
    %v500 = vpack.c.b16 %v486, %v485
    %v501 = vpack.c.b16 %v488, %v487
    %v502 = vpack.c.b16 %v490, %v489
    %v503 = vpack.c.b16 %v492, %v491
    %v504 = vpack.c.b16 %v494, %v493
    %v505 = vpack.c.b16 %v496, %v495
    %v506 = vpack.c.b16 %v498, %v497
    %515 = vmatprep.subr.bf16.mxu0 0
    %516 = vmatpush1.bf16.msra.mxu0 %v499
    %517 = vmatprep.subr.bf16.mxu0 0
    %518 = vmatpush1.bf16.msra.mxu0 %v500
    %519 = vmatprep.subr.bf16.mxu0 0
    %520 = vmatpush1.bf16.msra.mxu0 %v501
    %521 = vmatprep.subr.bf16.mxu0 0
    %522 = vmatpush1.bf16.msra.mxu0 %v502
    %523 = vmatprep.subr.bf16.mxu0 0
    %524 = vmatpush1.bf16.msra.mxu0 %v503
    %525 = vmatprep.subr.bf16.mxu0 0
    %526 = vmatpush1.bf16.msra.mxu0 %v504
    %527 = vmatprep.subr.bf16.mxu0 0
    %528 = vmatpush1.bf16.msra.mxu0 %v505
    %529 = vmatprep.subr.bf16.mxu0 0
    %530 = vmatpush1.bf16.msra.mxu0 %v506
    %531 = vmatprep.subr.bf16.mxu0 0
    %532 = vmatpush1.bf16.msra.mxu0 0
    %533 = vmatprep.subr.bf16.mxu0 0
    %534 = vmatpush1.bf16.msra.mxu0 0
    %535 = vmatprep.subr.bf16.mxu0 0
    %536 = vmatpush1.bf16.msra.mxu0 0
    %537 = vmatprep.subr.bf16.mxu0 0
    %538 = vmatpush1.bf16.msra.mxu0 0
    %539 = vmatprep.subr.bf16.mxu0 0
    %540 = vmatpush1.bf16.msra.mxu0 0
    %541 = vmatprep.subr.bf16.mxu0 0
    %542 = vmatpush1.bf16.msra.mxu0 0
    %543 = vmatprep.subr.bf16.mxu0 0
    %544 = vmatpush1.bf16.msra.mxu0 0
    %545 = vmatprep.subr.bf16.mxu0 0
    %546 = vmatpush1.bf16.msra.mxu0 0
    %547 = vmatprep.mubr.bf16.mxu0 0
    %548 = vmatmul.mubr.bf16.gmra.mrb[0].mxu0 %v443
    %v549 = vpop.f32.mrb[0].mxu0
    %v550 = vadd.f32 %v465, %v549
    %v551 = vpop.f32.mrb[0].mxu0
    %v552 = vpop.f32.mrb[0].mxu0
    %v553 = vpop.f32.mrb[0].mxu0
    %554 = vdwg.mxu0
    %v555 = vld [vmem:[%s9] sm:$0x1]
    %v557 = vlaneseq
    %v558 = vshrl.u32 %v557, 7
    %v559 = vsub.s32 0, %v558
    %v560 = vrot.slane %v555, %v559
    %vm562 = vcmp.ne.f32.partialorder %v560, 0.0
    %v563 = vsel %vm562, %v103, %v550
    %564 = vst [vmem:[#allocation11] sm:$0xff] %v563
    // Predicated region
    $region62: #{tpu_custom_call.1} parent=1 // pred_check
      _
    $region63: #{tpu_custom_call.1} parent=1 // pred_check_branch
      %566 = sbr.rel (0) target = $region65
    $region64: #{tpu_custom_call.1} parent=1 // pred_region
      %s568 = ssub.s32 128, 128
      %569 = vsyncadd [#allocation4], %s568
      %s571 = sshll.u32 [#allocation11], 4
      %s572 = int_to_ptr.vmem [resolvable:$true] %s571
      %574 = dma.vmem_to_hbm [thread:$0]  %s572, 128, %s10, [#allocation4]
    $region65: #{tpu_custom_call.1} parent=1 // pred_fallthru
      _
    // Predicated region
    $region66: #{tpu_custom_call.1} parent=1 // pred_check
      _
    $region67: #{tpu_custom_call.1} parent=1 // pred_check_branch
      %576 = sbr.rel (0) target = $region69
    $region68: #{tpu_custom_call.1} parent=1 // pred_region
      %577 = dma.done [#allocation4], 128
    $region69: #{tpu_custom_call.1} parent=1 // pred_fallthru
      _
    %578 = vsyncpa [#allocation3], 1
    %579 = vsyncpa [#allocation6], 1
    %580 = vsyncpa [#allocation9], 1
    %581 = vsyncpa [#allocation4], 1

</llo_original>
